<compile_context>
chip_gen: v7x
topology: tpu7x:2x2x1
jax: 0.10.0
libtpu: 0.0.40
codegen_flags: <defaults>
</compile_context>

<pallas_src>
import functools

import jax
import jax.numpy as jnp
from jax import lax
from jax.experimental import pallas as pl
from jax.experimental.pallas import tpu as pltpu


def _gelu_exact(x):
    # PyTorch nn.GELU() / F.gelu default = exact erf formulation
    return 0.5 * x * (1.0 + lax.erf(x * (1.0 / jnp.sqrt(jnp.float32(2.0)))))


def transformer_block_kernel(
    x_ref,        # (B, N, D) f32
    p_ref,        # (R, LANES) f32 parameter slab (see pack_params for layout)
    o_ref,        # (B, N, D) f32
    *, B, N, D, heads, dim_head, ff_inner, approx_softmax_recip,
):
    BN = B * N
    inner = heads * dim_head
    dh = dim_head

    # Static row offsets into the parameter slab (must match pack_params).
    R_QKV = 0                      # (D, LANES): cols [0:3*inner] = [wq*scale | wk | wv]
    R_W1  = R_QKV + D              # (D, LANES): cols [0:2*ff_inner] = GEGLU proj [value | gate]
    R_WO  = R_W1 + D               # (inner, LANES): cols [0:D] = wo
    R_W2  = R_WO + inner           # (ff_inner, LANES): cols [0:D] = w2
    R_VEC = R_W2 + ff_inner        # 7 rows: ln1_g, ln1_b, ln2_g, ln2_b, bo, b2, b1

    x = x_ref[...].reshape(BN, D)                                      # (BN, D)

    ln1_g = p_ref[R_VEC + 0:R_VEC + 1, 0:D]
    ln1_b = p_ref[R_VEC + 1:R_VEC + 2, 0:D]
    ln2_g = p_ref[R_VEC + 2:R_VEC + 3, 0:D]
    ln2_b = p_ref[R_VEC + 3:R_VEC + 4, 0:D]
    bo    = p_ref[R_VEC + 4:R_VEC + 5, 0:D]
    b2    = p_ref[R_VEC + 5:R_VEC + 6, 0:D]
    b1    = p_ref[R_VEC + 6:R_VEC + 7, 0:2 * ff_inner]

    # ---- LayerNorm 1 (pre-attention) ----
    mu = jnp.mean(x, axis=-1, keepdims=True)
    var = jnp.mean((x - mu) ** 2, axis=-1, keepdims=True)
    xn = (x - mu) * lax.rsqrt(var + 1e-5) * ln1_g + ln1_b              # (BN, D)

    # ---- Self-attention (context=None => context == normed x) ----
    # Single fused lane-dense projection; scale is pre-folded into the wq columns.
    wqkv = p_ref[R_QKV:R_QKV + D, :]                                   # (D, LANES)
    qkv = jnp.dot(xn, wqkv, preferred_element_type=jnp.float32)        # (BN, LANES)

    # Per-head views of the fused projection, stacked head-major along axis 0:
    # index = h*B + b  -> attention stays within the same (batch, head).
    def split_heads(col0):
        return jnp.concatenate(
            [qkv[:, col0 + h * dh: col0 + (h + 1) * dh].reshape(B, N, dh)
             for h in range(heads)],
            axis=0)                                                    # (heads*B, N, dh)

    q = split_heads(0)
    k = split_heads(inner)
    v = split_heads(2 * inner)

    sim = jnp.einsum("bid,bjd->bij", q, k,
                     preferred_element_type=jnp.float32)               # (heads*B, N, N)
    sim = sim - jnp.max(sim, axis=-1, keepdims=True)
    p = jnp.exp(sim)
    denom = jnp.sum(p, axis=-1, keepdims=True)
    if approx_softmax_recip:
        p = p * pl.reciprocal(denom, approx=True)   # EUP slot; ~1e-4 relative error
    else:
        p = p / denom

    out = jnp.einsum("bij,bjd->bid", p, v,
                     preferred_element_type=jnp.float32)               # (heads*B, N, dh)

    # Merge heads back to (BN, inner); column order = h*dh + d (matches PyTorch).
    out = jnp.concatenate([out[h * B:(h + 1) * B] for h in range(heads)],
                          axis=-1).reshape(BN, inner)

    wo = p_ref[R_WO:R_WO + inner, 0:D]                                 # (inner, D)
    attn = jnp.dot(out, wo, preferred_element_type=jnp.float32) + bo   # (BN, D)

    x = x + attn                                                       # residual 1

    # ---- LayerNorm 2 (pre-FF) ----
    mu2 = jnp.mean(x, axis=-1, keepdims=True)
    var2 = jnp.mean((x - mu2) ** 2, axis=-1, keepdims=True)
    xn2 = (x - mu2) * lax.rsqrt(var2 + 1e-5) * ln2_g + ln2_b

    # ---- FeedForward with GEGLU: one fused 2*ff_inner-wide projection ----
    w1 = p_ref[R_W1:R_W1 + D, 0:2 * ff_inner]                          # (D, 2*ff_inner)
    h12 = jnp.dot(xn2, w1, preferred_element_type=jnp.float32) + b1    # (BN, 2*ff_inner)
    a = h12[:, 0:ff_inner]
    g = h12[:, ff_inner:2 * ff_inner]

    w2 = p_ref[R_W2:R_W2 + ff_inner, 0:D]                              # (ff_inner, D)
    ff = jnp.dot(a * _gelu_exact(g), w2,
                 preferred_element_type=jnp.float32) + b2              # (BN, D)

    o_ref[...] = (x + ff).reshape(B, N, D)                             # residual 2


def pack_params(params, *, D, heads, dim_head, ff_inner):
    """Pack every weight/bias/LN vector into ONE lane-dense f32 slab.

    Called once, OUTSIDE the per-forward path (per perf review: no per-call
    tile/stack/transpose XLA ops). Lane dim is a multiple of 128; rows padded
    to a multiple of 8.
    """
    inner = heads * dim_head
    scale = dim_head ** -0.5
    max_w = max(3 * inner, 2 * ff_inner, D)
    lanes = ((max_w + 127) // 128) * 128

    def pad_cols(w):
        return jnp.pad(w, ((0, 0), (0, lanes - w.shape[1])))

    wqkv = jnp.concatenate([params["wq"] * scale, params["wk"], params["wv"]],
                           axis=1)                                     # (D, 3*inner)
    rows = [
        pad_cols(wqkv),            # R_QKV
        pad_cols(params["w1"]),    # R_W1
        pad_cols(params["wo"]),    # R_WO
        pad_cols(params["w2"]),    # R_W2
        pad_cols(params["ln1_g"]),
        pad_cols(params["ln1_b"]),
        pad_cols(params["ln2_g"]),
        pad_cols(params["ln2_b"]),
        pad_cols(params["bo"]),
        pad_cols(params["b2"]),
        pad_cols(params["b1"]),
    ]
    slab = jnp.concatenate(rows, axis=0).astype(jnp.float32)
    pad_r = (-slab.shape[0]) % 8
    if pad_r:
        slab = jnp.pad(slab, ((0, pad_r), (0, 0)))
    return slab


def transformer_block(x, slab, *, heads, dim_head, ff_inner,
                      approx_softmax_recip=True):
    B, N, D = x.shape
    kernel = functools.partial(
        transformer_block_kernel,
        B=B, N=N, D=D, heads=heads, dim_head=dim_head, ff_inner=ff_inner,
        approx_softmax_recip=approx_softmax_recip,
    )
    # Gridless single invocation: whole problem is VMEM-resident, the param slab
    # and x are DMA'd exactly once each.  For production shapes, tile BN with a
    # "parallel" grid axis (v7x: 2 TCs) and re-budget VMEM (v7x: 64 MiB physical).
    return pl.pallas_call(
        kernel,
        out_shape=jax.ShapeDtypeStruct((B, N, D), x.dtype),
        compiler_params=pltpu.CompilerParams(vmem_limit_bytes=32 * 1024 * 1024),
    )(x, slab)


def reference_jax(x, params, *, heads, dim_head, ff_inner):
    """Pure-JAX reference mirroring the PyTorch forward (dropout=0)."""
    def ln(x, g, b):
        mu = jnp.mean(x, axis=-1, keepdims=True)
        var = jnp.mean((x - mu) ** 2, axis=-1, keepdims=True)
        return (x - mu) / jnp.sqrt(var + 1e-5) * g[0] + b[0]

    B, N, D = x.shape
    xn = ln(x, params["ln1_g"], params["ln1_b"])
    q = xn @ params["wq"]
    k = xn @ params["wk"]
    v = xn @ params["wv"]

    def split(t):
        return t.reshape(B, N, heads, dim_head).transpose(0, 2, 1, 3)

    qh, kh, vh = split(q), split(k), split(v)
    sim = jnp.einsum("bhid,bhjd->bhij", qh, kh) * (dim_head ** -0.5)
    attn = jax.nn.softmax(sim, axis=-1)
    out = jnp.einsum("bhij,bhjd->bhid", attn, vh)
    out = out.transpose(0, 2, 1, 3).reshape(B, N, heads * dim_head)
    out = out @ params["wo"] + params["bo"][0]
    x = x + out
    xn2 = ln(x, params["ln2_g"], params["ln2_b"])
    h12 = xn2 @ params["w1"] + params["b1"][0]
    a, g = h12[..., :ff_inner], h12[..., ff_inner:]
    ff = (a * _gelu_exact(g)) @ params["w2"] + params["b2"][0]
    return x + ff


if __name__ == "__main__":
    # Module config: TransformerBlock(dim=32, n_heads=4, d_head=8, gated_ff=True, mult_ff=2)
    dim, n_heads, d_head = 32, 4, 8
    inner_dim = n_heads * d_head          # 32
    ff_inner = int(dim * 2)               # mult_ff=2 -> 64
    B, N = 2, 16

    key = jax.random.PRNGKey(0)
    ks = jax.random.split(key, 12)
    s = 0.05
    params = {
        "ln1_g": jnp.ones((1, dim), jnp.float32),
        "ln1_b": jnp.zeros((1, dim), jnp.float32),
        "wq": jax.random.normal(ks[0], (dim, inner_dim), jnp.float32) * s,
        "wk": jax.random.normal(ks[1], (dim, inner_dim), jnp.float32) * s,
        "wv": jax.random.normal(ks[2], (dim, inner_dim), jnp.float32) * s,
        "wo": jax.random.normal(ks[3], (inner_dim, dim), jnp.float32) * s,
        "bo": jax.random.normal(ks[4], (1, dim), jnp.float32) * s,
        "ln2_g": jnp.ones((1, dim), jnp.float32),
        "ln2_b": jnp.zeros((1, dim), jnp.float32),
        "w1": jax.random.normal(ks[5], (dim, 2 * ff_inner), jnp.float32) * s,
        "b1": jax.random.normal(ks[6], (1, 2 * ff_inner), jnp.float32) * s,
        "w2": jax.random.normal(ks[7], (ff_inner, dim), jnp.float32) * s,
        "b2": jax.random.normal(ks[8], (1, dim), jnp.float32) * s,
    }

    x = jax.random.normal(ks[9], (B, N, dim), jnp.float32)
    # NOTE: forward(x, context) ignores `context` for attn1 (pure self-attention),
    # so the kernel takes only x + parameters; dropout=0.0 is identity.

    # One-time parameter packing (outside the per-call path).
    slab = jax.block_until_ready(
        pack_params(params, D=dim, heads=n_heads, dim_head=d_head, ff_inner=ff_inner))

    out = transformer_block(x, slab, heads=n_heads, dim_head=d_head, ff_inner=ff_inner)
    out = jax.block_until_ready(out)

    ref = reference_jax(x, params, heads=n_heads, dim_head=d_head, ff_inner=ff_inner)
    assert out.shape == (B, N, dim)
    # Tolerance accounts for the approx (EUP) reciprocal in the softmax denominator.
    assert jnp.allclose(out, ref, atol=1e-3, rtol=1e-3), "mismatch vs JAX reference"

    print("KERNEL_OK")
</pallas_src>

<mosaic_0001>
module attributes {stable_mosaic.version = 11 : i64} {
  func.func @transformer_block_kernel(%arg0: memref<2x16x32xf32, #tpu.memory_space<vmem>>, %arg1: memref<168x128xf32, #tpu.memory_space<vmem>>, %arg2: memref<2x16x32xf32, #tpu.memory_space<vmem>>) attributes {dimension_semantics = [], scalar_prefetch = 0 : i64, scratch_operands = 0 : i64, tpu.core_type = #tpu.core_type<tc>} {
    %c0 = arith.constant 0 : index
    %c0_0 = arith.constant 0 : index
    %c0_1 = arith.constant 0 : index
    %0 = vector.load %arg0[%c0, %c0_0, %c0_1] : memref<2x16x32xf32, #tpu.memory_space<vmem>>, vector<2x16x32xf32>
    %1 = vector.shape_cast %0 : vector<2x16x32xf32> to vector<32x32xf32>
    %c160 = arith.constant 160 : index
    %c0_2 = arith.constant 0 : index
    %2 = vector.load %arg1[%c160, %c0_2] : memref<168x128xf32, #tpu.memory_space<vmem>>, vector<1x32xf32>
    %c161 = arith.constant 161 : index
    %c0_3 = arith.constant 0 : index
    %3 = vector.load %arg1[%c161, %c0_3] : memref<168x128xf32, #tpu.memory_space<vmem>>, vector<1x32xf32>
    %c162 = arith.constant 162 : index
    %c0_4 = arith.constant 0 : index
    %4 = vector.load %arg1[%c162, %c0_4] : memref<168x128xf32, #tpu.memory_space<vmem>>, vector<1x32xf32>
    %c163 = arith.constant 163 : index
    %c0_5 = arith.constant 0 : index
    %5 = vector.load %arg1[%c163, %c0_5] : memref<168x128xf32, #tpu.memory_space<vmem>>, vector<1x32xf32>
    %c164 = arith.constant 164 : index
    %c0_6 = arith.constant 0 : index
    %6 = vector.load %arg1[%c164, %c0_6] : memref<168x128xf32, #tpu.memory_space<vmem>>, vector<1x32xf32>
    %c165 = arith.constant 165 : index
    %c0_7 = arith.constant 0 : index
    %7 = vector.load %arg1[%c165, %c0_7] : memref<168x128xf32, #tpu.memory_space<vmem>>, vector<1x32xf32>
    %c166 = arith.constant 166 : index
    %c0_8 = arith.constant 0 : index
    %8 = vector.load %arg1[%c166, %c0_8] : memref<168x128xf32, #tpu.memory_space<vmem>>, vector<1x128xf32>
    %cst = arith.constant dense<0.000000e+00> : vector<32xf32>
    %9 = vector.multi_reduction <add>, %1, %cst [1] : vector<32x32xf32> to vector<32xf32>
    %10 = vector.shape_cast %9 : vector<32xf32> to vector<32x1xf32>
    %cst_9 = arith.constant 3.200000e+01 : f32
    %11 = vector.broadcast %cst_9 : f32 to vector<32x1xf32>
    %12 = arith.divf %10, %11 : vector<32x1xf32>
    %13 = vector.broadcast %12 : vector<32x1xf32> to vector<32x32xf32>
    %14 = arith.subf %1, %13 : vector<32x32xf32>
    %15 = arith.mulf %14, %14 : vector<32x32xf32>
    %cst_10 = arith.constant dense<0.000000e+00> : vector<32xf32>
    %16 = vector.multi_reduction <add>, %15, %cst_10 [1] : vector<32x32xf32> to vector<32xf32>
    %17 = vector.shape_cast %16 : vector<32xf32> to vector<32x1xf32>
    %cst_11 = arith.constant 3.200000e+01 : f32
    %18 = vector.broadcast %cst_11 : f32 to vector<32x1xf32>
    %19 = arith.divf %17, %18 : vector<32x1xf32>
    %20 = vector.broadcast %12 : vector<32x1xf32> to vector<32x32xf32>
    %21 = arith.subf %1, %20 : vector<32x32xf32>
    %cst_12 = arith.constant 9.99999974E-6 : f32
    %22 = vector.broadcast %cst_12 : f32 to vector<32x1xf32>
    %23 = arith.addf %19, %22 : vector<32x1xf32>
    %24 = math.rsqrt %23 : vector<32x1xf32>
    %25 = vector.broadcast %24 : vector<32x1xf32> to vector<32x32xf32>
    %26 = arith.mulf %21, %25 : vector<32x32xf32>
    %27 = vector.broadcast %2 : vector<1x32xf32> to vector<32x32xf32>
    %28 = arith.mulf %26, %27 : vector<32x32xf32>
    %29 = vector.broadcast %3 : vector<1x32xf32> to vector<32x32xf32>
    %30 = arith.addf %28, %29 : vector<32x32xf32>
    %c0_13 = arith.constant 0 : index
    %c0_14 = arith.constant 0 : index
    %31 = vector.load %arg1[%c0_13, %c0_14] : memref<168x128xf32, #tpu.memory_space<vmem>>, vector<32x128xf32>
    %cst_15 = arith.constant dense<0.000000e+00> : vector<32x128xf32>
    %32 = tpu.matmul %30, %31, %cst_15 {dimension_numbers = #tpu.dot_dimension_numbers<[1], [0], [0], [1], [0, 0, 1, 1], [], []>} : vector<32x32xf32>, vector<32x128xf32>, vector<32x128xf32> -> vector<32x128xf32>
    %33 = vector.extract_strided_slice %32 {offsets = [0, 0], sizes = [32, 8], strides = [1, 1]} : vector<32x128xf32> to vector<32x8xf32>
    %34 = vector.shape_cast %33 : vector<32x8xf32> to vector<2x16x8xf32>
    %35 = vector.extract_strided_slice %32 {offsets = [0, 8], sizes = [32, 8], strides = [1, 1]} : vector<32x128xf32> to vector<32x8xf32>
    %36 = vector.shape_cast %35 : vector<32x8xf32> to vector<2x16x8xf32>
    %37 = vector.extract_strided_slice %32 {offsets = [0, 16], sizes = [32, 8], strides = [1, 1]} : vector<32x128xf32> to vector<32x8xf32>
    %38 = vector.shape_cast %37 : vector<32x8xf32> to vector<2x16x8xf32>
    %39 = vector.extract_strided_slice %32 {offsets = [0, 24], sizes = [32, 8], strides = [1, 1]} : vector<32x128xf32> to vector<32x8xf32>
    %40 = vector.shape_cast %39 : vector<32x8xf32> to vector<2x16x8xf32>
    %41 = tpu.concatenate %34, %36, %38, %40 in 0 : vector<2x16x8xf32>, vector<2x16x8xf32>, vector<2x16x8xf32>, vector<2x16x8xf32> -> vector<8x16x8xf32>
    %42 = vector.extract_strided_slice %32 {offsets = [0, 32], sizes = [32, 8], strides = [1, 1]} : vector<32x128xf32> to vector<32x8xf32>
    %43 = vector.shape_cast %42 : vector<32x8xf32> to vector<2x16x8xf32>
    %44 = vector.extract_strided_slice %32 {offsets = [0, 40], sizes = [32, 8], strides = [1, 1]} : vector<32x128xf32> to vector<32x8xf32>
    %45 = vector.shape_cast %44 : vector<32x8xf32> to vector<2x16x8xf32>
    %46 = vector.extract_strided_slice %32 {offsets = [0, 48], sizes = [32, 8], strides = [1, 1]} : vector<32x128xf32> to vector<32x8xf32>
    %47 = vector.shape_cast %46 : vector<32x8xf32> to vector<2x16x8xf32>
    %48 = vector.extract_strided_slice %32 {offsets = [0, 56], sizes = [32, 8], strides = [1, 1]} : vector<32x128xf32> to vector<32x8xf32>
    %49 = vector.shape_cast %48 : vector<32x8xf32> to vector<2x16x8xf32>
    %50 = tpu.concatenate %43, %45, %47, %49 in 0 : vector<2x16x8xf32>, vector<2x16x8xf32>, vector<2x16x8xf32>, vector<2x16x8xf32> -> vector<8x16x8xf32>
    %51 = vector.extract_strided_slice %32 {offsets = [0, 64], sizes = [32, 8], strides = [1, 1]} : vector<32x128xf32> to vector<32x8xf32>
    %52 = vector.shape_cast %51 : vector<32x8xf32> to vector<2x16x8xf32>
    %53 = vector.extract_strided_slice %32 {offsets = [0, 72], sizes = [32, 8], strides = [1, 1]} : vector<32x128xf32> to vector<32x8xf32>
    %54 = vector.shape_cast %53 : vector<32x8xf32> to vector<2x16x8xf32>
    %55 = vector.extract_strided_slice %32 {offsets = [0, 80], sizes = [32, 8], strides = [1, 1]} : vector<32x128xf32> to vector<32x8xf32>
    %56 = vector.shape_cast %55 : vector<32x8xf32> to vector<2x16x8xf32>
    %57 = vector.extract_strided_slice %32 {offsets = [0, 88], sizes = [32, 8], strides = [1, 1]} : vector<32x128xf32> to vector<32x8xf32>
    %58 = vector.shape_cast %57 : vector<32x8xf32> to vector<2x16x8xf32>
    %59 = tpu.concatenate %52, %54, %56, %58 in 0 : vector<2x16x8xf32>, vector<2x16x8xf32>, vector<2x16x8xf32>, vector<2x16x8xf32> -> vector<8x16x8xf32>
    "tpu.trace_start"() <{level = 10 : i32, message = "bid,bjd->bij"}> : () -> ()
    %cst_16 = arith.constant dense<0.000000e+00> : vector<8x16x16xf32>
    %60 = tpu.matmul %41, %50, %cst_16 {dimension_numbers = #tpu.dot_dimension_numbers<[2], [2], [1], [1], [0, 0, 0, 1, 1, 1], [0], [0]>} : vector<8x16x8xf32>, vector<8x16x8xf32>, vector<8x16x16xf32> -> vector<8x16x16xf32>
    "tpu.trace_stop"() : () -> ()
    %cst_17 = arith.constant dense<0xFF800000> : vector<8x16xf32>
    %61 = vector.multi_reduction <maximumf>, %60, %cst_17 [2] : vector<8x16x16xf32> to vector<8x16xf32>
    %62 = vector.shape_cast %61 : vector<8x16xf32> to vector<8x16x1xf32>
    %63 = vector.broadcast %62 : vector<8x16x1xf32> to vector<8x16x16xf32>
    %64 = arith.subf %60, %63 : vector<8x16x16xf32>
    %65 = math.exp %64 : vector<8x16x16xf32>
    %cst_18 = arith.constant dense<0.000000e+00> : vector<8x16xf32>
    %66 = vector.multi_reduction <add>, %65, %cst_18 [2] : vector<8x16x16xf32> to vector<8x16xf32>
    %67 = vector.shape_cast %66 : vector<8x16xf32> to vector<8x16x1xf32>
    %68 = tpu.reciprocal %67 {approx = true} : vector<8x16x1xf32> -> vector<8x16x1xf32>
    %69 = vector.broadcast %68 : vector<8x16x1xf32> to vector<8x16x16xf32>
    %70 = arith.mulf %65, %69 : vector<8x16x16xf32>
    "tpu.trace_start"() <{level = 10 : i32, message = "bij,bjd->bid"}> : () -> ()
    %cst_19 = arith.constant dense<0.000000e+00> : vector<8x16x8xf32>
    %71 = tpu.matmul %70, %59, %cst_19 {dimension_numbers = #tpu.dot_dimension_numbers<[2], [1], [1], [2], [0, 0, 0, 1, 1, 2], [0], [0]>} : vector<8x16x16xf32>, vector<8x16x8xf32>, vector<8x16x8xf32> -> vector<8x16x8xf32>
    "tpu.trace_stop"() : () -> ()
    %72 = vector.extract_strided_slice %71 {offsets = [0, 0, 0], sizes = [2, 16, 8], strides = [1, 1, 1]} : vector<8x16x8xf32> to vector<2x16x8xf32>
    %73 = vector.extract_strided_slice %71 {offsets = [2, 0, 0], sizes = [2, 16, 8], strides = [1, 1, 1]} : vector<8x16x8xf32> to vector<2x16x8xf32>
    %74 = vector.extract_strided_slice %71 {offsets = [4, 0, 0], sizes = [2, 16, 8], strides = [1, 1, 1]} : vector<8x16x8xf32> to vector<2x16x8xf32>
    %75 = vector.extract_strided_slice %71 {offsets = [6, 0, 0], sizes = [2, 16, 8], strides = [1, 1, 1]} : vector<8x16x8xf32> to vector<2x16x8xf32>
    %76 = tpu.concatenate %72, %73, %74, %75 in 2 : vector<2x16x8xf32>, vector<2x16x8xf32>, vector<2x16x8xf32>, vector<2x16x8xf32> -> vector<2x16x32xf32>
    %77 = vector.shape_cast %76 : vector<2x16x32xf32> to vector<32x32xf32>
    %c64 = arith.constant 64 : index
    %c0_20 = arith.constant 0 : index
    %78 = vector.load %arg1[%c64, %c0_20] : memref<168x128xf32, #tpu.memory_space<vmem>>, vector<32x32xf32>
    %cst_21 = arith.constant dense<0.000000e+00> : vector<32x32xf32>
    %79 = tpu.matmul %77, %78, %cst_21 {dimension_numbers = #tpu.dot_dimension_numbers<[1], [0], [0], [1], [0, 0, 1, 1], [], []>} : vector<32x32xf32>, vector<32x32xf32>, vector<32x32xf32> -> vector<32x32xf32>
    %80 = vector.broadcast %6 : vector<1x32xf32> to vector<32x32xf32>
    %81 = arith.addf %79, %80 : vector<32x32xf32>
    %82 = arith.addf %1, %81 : vector<32x32xf32>
    %cst_22 = arith.constant dense<0.000000e+00> : vector<32xf32>
    %83 = vector.multi_reduction <add>, %82, %cst_22 [1] : vector<32x32xf32> to vector<32xf32>
    %84 = vector.shape_cast %83 : vector<32xf32> to vector<32x1xf32>
    %cst_23 = arith.constant 3.200000e+01 : f32
    %85 = vector.broadcast %cst_23 : f32 to vector<32x1xf32>
    %86 = arith.divf %84, %85 : vector<32x1xf32>
    %87 = vector.broadcast %86 : vector<32x1xf32> to vector<32x32xf32>
    %88 = arith.subf %82, %87 : vector<32x32xf32>
    %89 = arith.mulf %88, %88 : vector<32x32xf32>
    %cst_24 = arith.constant dense<0.000000e+00> : vector<32xf32>
    %90 = vector.multi_reduction <add>, %89, %cst_24 [1] : vector<32x32xf32> to vector<32xf32>
    %91 = vector.shape_cast %90 : vector<32xf32> to vector<32x1xf32>
    %cst_25 = arith.constant 3.200000e+01 : f32
    %92 = vector.broadcast %cst_25 : f32 to vector<32x1xf32>
    %93 = arith.divf %91, %92 : vector<32x1xf32>
    %94 = vector.broadcast %86 : vector<32x1xf32> to vector<32x32xf32>
    %95 = arith.subf %82, %94 : vector<32x32xf32>
    %cst_26 = arith.constant 9.99999974E-6 : f32
    %96 = vector.broadcast %cst_26 : f32 to vector<32x1xf32>
    %97 = arith.addf %93, %96 : vector<32x1xf32>
    %98 = math.rsqrt %97 : vector<32x1xf32>
    %99 = vector.broadcast %98 : vector<32x1xf32> to vector<32x32xf32>
    %100 = arith.mulf %95, %99 : vector<32x32xf32>
    %101 = vector.broadcast %4 : vector<1x32xf32> to vector<32x32xf32>
    %102 = arith.mulf %100, %101 : vector<32x32xf32>
    %103 = vector.broadcast %5 : vector<1x32xf32> to vector<32x32xf32>
    %104 = arith.addf %102, %103 : vector<32x32xf32>
    %c32 = arith.constant 32 : index
    %c0_27 = arith.constant 0 : index
    %105 = vector.load %arg1[%c32, %c0_27] : memref<168x128xf32, #tpu.memory_space<vmem>>, vector<32x128xf32>
    %cst_28 = arith.constant dense<0.000000e+00> : vector<32x128xf32>
    %106 = tpu.matmul %104, %105, %cst_28 {dimension_numbers = #tpu.dot_dimension_numbers<[1], [0], [0], [1], [0, 0, 1, 1], [], []>} : vector<32x32xf32>, vector<32x128xf32>, vector<32x128xf32> -> vector<32x128xf32>
    %107 = vector.broadcast %8 : vector<1x128xf32> to vector<32x128xf32>
    %108 = arith.addf %106, %107 : vector<32x128xf32>
    %109 = vector.extract_strided_slice %108 {offsets = [0, 0], sizes = [32, 64], strides = [1, 1]} : vector<32x128xf32> to vector<32x64xf32>
    %110 = vector.extract_strided_slice %108 {offsets = [0, 64], sizes = [32, 64], strides = [1, 1]} : vector<32x128xf32> to vector<32x64xf32>
    %c96 = arith.constant 96 : index
    %c0_29 = arith.constant 0 : index
    %111 = vector.load %arg1[%c96, %c0_29] : memref<168x128xf32, #tpu.memory_space<vmem>>, vector<64x32xf32>
    %cst_30 = arith.constant 5.000000e-01 : f32
    %112 = vector.broadcast %cst_30 : f32 to vector<32x64xf32>
    %113 = arith.mulf %112, %110 : vector<32x64xf32>
    %cst_31 = arith.constant 2.000000e+00 : f32
    %114 = math.sqrt %cst_31 : f32
    %cst_32 = arith.constant 1.000000e+00 : f32
    %115 = arith.divf %cst_32, %114 : f32
    %116 = vector.broadcast %115 : f32 to vector<32x64xf32>
    %117 = arith.mulf %110, %116 : vector<32x64xf32>
    %118 = math.erf %117 : vector<32x64xf32>
    %cst_33 = arith.constant 1.000000e+00 : f32
    %119 = vector.broadcast %cst_33 : f32 to vector<32x64xf32>
    %120 = arith.addf %119, %118 : vector<32x64xf32>
    %121 = arith.mulf %113, %120 : vector<32x64xf32>
    %122 = arith.mulf %109, %121 : vector<32x64xf32>
    %cst_34 = arith.constant dense<0.000000e+00> : vector<32x32xf32>
    %123 = tpu.matmul %122, %111, %cst_34 {dimension_numbers = #tpu.dot_dimension_numbers<[1], [0], [0], [1], [0, 0, 1, 1], [], []>} : vector<32x64xf32>, vector<64x32xf32>, vector<32x32xf32> -> vector<32x32xf32>
    %124 = vector.broadcast %7 : vector<1x32xf32> to vector<32x32xf32>
    %125 = arith.addf %123, %124 : vector<32x32xf32>
    %126 = arith.addf %82, %125 : vector<32x32xf32>
    %127 = vector.shape_cast %126 : vector<32x32xf32> to vector<2x16x32xf32>
    %c0_35 = arith.constant 0 : index
    %c0_36 = arith.constant 0 : index
    %c0_37 = arith.constant 0 : index
    %128 = vector.load %arg2[%c0_35, %c0_36, %c0_37] : memref<2x16x32xf32, #tpu.memory_space<vmem>>, vector<2x16x32xf32>
    tpu.vector_store %arg2[%c0_35, %c0_36, %c0_37], %127 {strides = array<i32>} : memref<2x16x32xf32, #tpu.memory_space<vmem>>, vector<2x16x32xf32>,
    return
  }
}

</mosaic_0001>

<llo_original>
// kernel: tpu_custom_call.1
$region0: #{tpu_custom_call.1}
  #allocation0 [shape = 'u32[]', space=smem, size = 0x4, offset = 0x4, fixed_abs, tag = 'smem constant byte address 0x4 - core index']
  #allocation1 [shape = 'u32[144,128]{1,0:T(1,128)}', space=vmem, size = 0x12000, scoped, tag = 'internal scratch']
  %s0 = inlined_call_operand.hbm [shape: f32[2,16,32], index: 0, kind: input, shape index: {}]
  %s1 = inlined_call_operand.hbm [shape: f32[168,128], index: 1, kind: input, shape index: {}]
  %s2 = inlined_call_operand.hbm [shape: f32[2,16,32], index: 2, kind: output, shape index: {}]
  %s3 = sld [smem:[#allocation0]]
  $region26: #{tpu_custom_call.1} parent=0
    _
  %s5 = ssub.s32 1, %s3
  %s6 = scalar_select 0, %s5, %s3
  $region1: #{tpu_custom_call.1} parent=0
    #allocation2 [shape = 'u8[16384]{0}', space=vmem, size = 0x4000, scoped, tag = 'input window, operand 0, single buffered']
    #allocation3 [shape = 's32[1]{0}', space=sflag, size = 0x4, scoped, tag = 'scoped memory for tpu_custom_call.1']
    #allocation4 [shape = 's32[1]{0}', space=sflag, size = 0x4, scoped, tag = 'scoped memory for tpu_custom_call.1']
    #allocation5 [shape = 'u8[86016]{0}', space=vmem, size = 0x15000, scoped, tag = 'input window, operand 1, single buffered']
    #allocation6 [shape = 's32[1]{0}', space=sflag, size = 0x4, scoped, tag = 'scoped memory for tpu_custom_call.1']
    #allocation7 [shape = 'u8[16384]{0}', space=vmem, size = 0x4000, scoped, tag = 'output window, operand 0, single buffered']
    %7 = vsyncpa [#allocation3], 0
    %8 = vsyncpa [#allocation6], 0
    %9 = vsyncpa [#allocation4], 0
    // Predicated region
    $region2: #{tpu_custom_call.1} parent=1 // pred_check
      _
    $region3: #{tpu_custom_call.1} parent=1 // pred_check_branch
      %11 = sbr.rel (0) target = $region5
    $region4: #{tpu_custom_call.1} parent=1 // pred_region
      %s13 = ssub.s32 512, 512
      %14 = vsyncadd [#allocation3], %s13
      %s15 = sshll.u32 [#allocation2], 4
      %s16 = int_to_ptr.vmem [resolvable:$true] %s15
      %21 = dma.hbm_to_vmem [thread:$0]  %s0, 512, %s16, [#allocation3], 128, 128, 8
    $region5: #{tpu_custom_call.1} parent=1 // pred_fallthru
      _
    // Predicated region
    $region6: #{tpu_custom_call.1} parent=1 // pred_check
      _
    $region7: #{tpu_custom_call.1} parent=1 // pred_check_branch
      %23 = sbr.rel (0) target = $region9
    $region8: #{tpu_custom_call.1} parent=1 // pred_region
      %s25 = ssub.s32 2688, 2688
      %26 = vsyncadd [#allocation6], %s25
      %s27 = sshll.u32 [#allocation5], 4
      %s28 = int_to_ptr.vmem [resolvable:$true] %s27
      %33 = dma.hbm_to_vmem [thread:$0]  %s1, 2688, %s28, [#allocation6], 128, 128, 8
    $region9: #{tpu_custom_call.1} parent=1 // pred_fallthru
      _
    // Predicated region
    $region10: #{tpu_custom_call.1} parent=1 // pred_check
      _
    $region11: #{tpu_custom_call.1} parent=1 // pred_check_branch
      %35 = sbr.rel (0) target = $region13
    $region12: #{tpu_custom_call.1} parent=1 // pred_region
      %36 = dma.done [#allocation3], 512
    $region13: #{tpu_custom_call.1} parent=1 // pred_fallthru
      _
    // Predicated region
    $region14: #{tpu_custom_call.1} parent=1 // pred_check
      _
    $region15: #{tpu_custom_call.1} parent=1 // pred_check_branch
      %38 = sbr.rel (0) target = $region17
    $region16: #{tpu_custom_call.1} parent=1 // pred_region
      %39 = dma.done [#allocation6], 2688
    $region17: #{tpu_custom_call.1} parent=1 // pred_fallthru
      _
    %v40 = vld [vmem:[#allocation2] sm:$0xff]
    %v41 = vld [vmem:[#allocation2 + $0x8] sm:$0xff]
    %v42 = vld [vmem:[#allocation2 + $0x10] sm:$0xff]
    %v43 = vld [vmem:[#allocation2 + $0x18] sm:$0xff]
    %v44 = vld [vmem:[#allocation5 + $0xa0] sm:$0x1]
    %v45 = vld [vmem:[#allocation5 + $0xa1] sm:$0x1]
    %v46 = vld [vmem:[#allocation5 + $0xa2] sm:$0x1]
    %v47 = vld [vmem:[#allocation5 + $0xa3] sm:$0x1]
    %v48 = vld [vmem:[#allocation5 + $0xa4] sm:$0x1]
    %v49 = vld [vmem:[#allocation5 + $0xa5] sm:$0x1]
    %v50 = vld [vmem:[#allocation5 + $0xa6] sm:$0x1]
    %vm51 = vcmask 261120
    %v52 = vsel %vm51, %v40, 0.0
    %53 = vadd.xlane.f32.xlu0 %v52
    %v54 = vpop.xlane.xlu0 %53
    %v55 = vsel %vm51, %v41, 0.0
    %56 = vadd.xlane.f32.xlu0 %v55
    %v57 = vpop.xlane.xlu0 %56
    %v58 = vsel %vm51, %v42, 0.0
    %59 = vadd.xlane.f32.xlu0 %v58
    %v60 = vpop.xlane.xlu0 %59
    %v61 = vsel %vm51, %v43, 0.0
    %62 = vadd.xlane.f32.xlu0 %v61
    %v63 = vpop.xlane.xlu0 %62
    %v64 = vrcp.pop 32.0
    %v65 = vmul.f32 %v54, %v64
    %v66 = vmul.f32 %v57, %v64
    %v67 = vmul.f32 %v60, %v64
    %v68 = vmul.f32 %v63, %v64
    %v69 = vsub.f32 %v40, %v65
    %v70 = vsub.f32 %v41, %v66
    %v71 = vsub.f32 %v42, %v67
    %v72 = vsub.f32 %v43, %v68
    %v73 = vmul.f32 %v69, %v69
    %v74 = vmul.f32 %v70, %v70
    %v75 = vmul.f32 %v71, %v71
    %v76 = vmul.f32 %v72, %v72
    %v77 = vsel %vm51, %v73, 0.0
    %78 = vadd.xlane.f32.xlu0 %v77
    %v79 = vpop.xlane.xlu0 %78
    %v80 = vsel %vm51, %v74, 0.0
    %81 = vadd.xlane.f32.xlu0 %v80
    %v82 = vpop.xlane.xlu0 %81
    %v83 = vsel %vm51, %v75, 0.0
    %84 = vadd.xlane.f32.xlu0 %v83
    %v85 = vpop.xlane.xlu0 %84
    %v86 = vsel %vm51, %v76, 0.0
    %87 = vadd.xlane.f32.xlu0 %v86
    %v88 = vpop.xlane.xlu0 %87
    %v89 = vmul.f32 %v79, %v64
    %v90 = vmul.f32 %v82, %v64
    %v91 = vmul.f32 %v85, %v64
    %v92 = vmul.f32 %v88, %v64
    %v93 = vadd.f32 %v89, 1e-05
    %v94 = vadd.f32 %v90, 1e-05
    %v95 = vadd.f32 %v91, 1e-05
    %v96 = vadd.f32 %v92, 1e-05
    %v97 = vrsqrt.pop %v93
    %v98 = vrsqrt.pop %v94
    %v99 = vrsqrt.pop %v95
    %v100 = vrsqrt.pop %v96
    %v101 = vmul.f32 %v69, %v97
    %v102 = vmul.f32 %v70, %v98
    %v103 = vmul.f32 %v71, %v99
    %v104 = vmul.f32 %v72, %v100
    %v105 = vlaneseq
    %v106 = vshrl.u32 %v105, 7
    %v107 = vsub.s32 0, %v106
    %v108 = vrot.slane %v44, %v107
    %v109 = vmul.f32 %v101, %v108
    %v110 = vmul.f32 %v102, %v108
    %v111 = vmul.f32 %v103, %v108
    %v112 = vmul.f32 %v104, %v108
    %v113 = vlaneseq
    %v114 = vshrl.u32 %v113, 7
    %v115 = vsub.s32 0, %v114
    %v116 = vrot.slane %v45, %v115
    %v117 = vadd.f32 %v109, %v116
    %v118 = vadd.f32 %v110, %v116
    %v119 = vadd.f32 %v111, %v116
    %v120 = vadd.f32 %v112, %v116
    %v121 = vld [vmem:[#allocation5] sm:$0xff]
    %v122 = vld [vmem:[#allocation5 + $0x8] sm:$0xff]
    %v123 = vld [vmem:[#allocation5 + $0x10] sm:$0xff]
    %v124 = vld [vmem:[#allocation5 + $0x18] sm:$0xff]
    %v126 = vsel %vm51, %v117, 0
    %v129 = vsel %vm51, %v118, 0
    %v132 = vsel %vm51, %v119, 0
    %v135 = vsel %vm51, %v120, 0
    %137 = vmatprep.subr.mxu0 0.0
    %138 = vmatpush1.msra.mxu0 %v121
    %139 = vmatprep.subr.mxu0 0.0
    %140 = vmatpush1.msra.mxu0 %v122
    %141 = vmatprep.subr.mxu0 0.0
    %142 = vmatpush1.msra.mxu0 %v123
    %143 = vmatprep.subr.mxu0 0.0
    %144 = vmatpush1.msra.mxu0 %v124
    %145 = vmatprep.subr.mxu0 0.0
    %146 = vmatpush1.msra.mxu0 0.0
    %147 = vmatprep.subr.mxu0 0.0
    %148 = vmatpush1.msra.mxu0 0.0
    %149 = vmatprep.subr.mxu0 0.0
    %150 = vmatpush1.msra.mxu0 0.0
    %151 = vmatprep.subr.mxu0 0.0
    %152 = vmatpush1.msra.mxu0 0.0
    %153 = vmatprep.subr.mxu0 0.0
    %154 = vmatpush1.msra.mxu0 0.0
    %155 = vmatprep.subr.mxu0 0.0
    %156 = vmatpush1.msra.mxu0 0.0
    %157 = vmatprep.subr.mxu0 0.0
    %158 = vmatpush1.msra.mxu0 0.0
    %159 = vmatprep.subr.mxu0 0.0
    %160 = vmatpush1.msra.mxu0 0.0
    %161 = vmatprep.subr.mxu0 0.0
    %162 = vmatpush1.msra.mxu0 0.0
    %163 = vmatprep.subr.mxu0 0.0
    %164 = vmatpush1.msra.mxu0 0.0
    %165 = vmatprep.subr.mxu0 0.0
    %166 = vmatpush1.msra.mxu0 0.0
    %167 = vmatprep.subr.mxu0 0.0
    %168 = vmatpush1.msra.mxu0 0.0
    %169 = vmatprep.subr.mxu0 0.0
    %170 = vmatpush1.msra.mxu0 0.0
    %171 = vmatprep.subr.mxu0 0.0
    %172 = vmatpush1.msra.mxu0 0.0
    %173 = vmatprep.subr.mxu0 0.0
    %174 = vmatpush1.msra.mxu0 0.0
    %175 = vmatprep.subr.mxu0 0.0
    %176 = vmatpush1.msra.mxu0 0.0
    %177 = vmatprep.subr.mxu0 0.0
    %178 = vmatpush1.msra.mxu0 0.0
    %179 = vmatprep.subr.mxu0 0.0
    %180 = vmatpush1.msra.mxu0 0.0
    %181 = vmatprep.subr.mxu0 0.0
    %182 = vmatpush1.msra.mxu0 0.0
    %183 = vmatprep.subr.mxu0 0.0
    %184 = vmatpush1.msra.mxu0 0.0
    %185 = vmatprep.subr.mxu0 0.0
    %186 = vmatpush1.msra.mxu0 0.0
    %187 = vmatprep.subr.mxu0 0.0
    %188 = vmatpush1.msra.mxu0 0.0
    %189 = vmatprep.subr.mxu0 0.0
    %190 = vmatpush1.msra.mxu0 0.0
    %191 = vmatprep.subr.mxu0 0.0
    %192 = vmatpush1.msra.mxu0 0.0
    %193 = vmatprep.subr.mxu0 0.0
    %194 = vmatpush1.msra.mxu0 0.0
    %195 = vmatprep.subr.mxu0 0.0
    %196 = vmatpush1.msra.mxu0 0.0
    %197 = vmatprep.subr.mxu0 0.0
    %198 = vmatpush1.msra.mxu0 0.0
    %199 = vmatprep.subr.mxu0 0.0
    %200 = vmatpush1.msra.mxu0 0.0
    %201 = vmatprep.mubr.f32.mxu0 0.0
    %202 = vmatmul.mubr.f32.gmra.mrb[0].mxu0 %v126
    %v203 = vpop.f32.mrb[0].mxu0
    %v204 = vadd.f32 0.0, %v203
    %v205 = vpop.f32.mrb[0].mxu0
    %206 = vmatprep.mubr.f32.mxu0 0.0
    %207 = vmatmul.mubr.f32.gmra.mrb[0].mxu0 %v129
    %v208 = vpop.f32.mrb[0].mxu0
    %v209 = vadd.f32 0.0, %v208
    %v210 = vpop.f32.mrb[0].mxu0
    %211 = vmatprep.mubr.f32.mxu0 0.0
    %212 = vmatmul.mubr.f32.gmra.mrb[0].mxu0 %v132
    %v213 = vpop.f32.mrb[0].mxu0
    %v214 = vadd.f32 0.0, %v213
    %v215 = vpop.f32.mrb[0].mxu0
    %216 = vmatprep.mubr.f32.mxu0 0.0
    %217 = vmatmul.mubr.f32.gmra.mrb[0].mxu0 %v135
    %v218 = vpop.f32.mrb[0].mxu0
    %v219 = vadd.f32 0.0, %v218
    %v220 = vpop.f32.mrb[0].mxu0
    %221 = vdwg.mxu0
    %226 = vrot.lane.b32.xlu0 %v204, 120
    %v227 = vpop.permute.xlu0 %226
    %228 = vrot.lane.b32.xlu0 %v209, 120
    %v229 = vpop.permute.xlu0 %228
    %230 = vrot.lane.b32.xlu0 %v214, 120
    %v231 = vpop.permute.xlu0 %230
    %232 = vrot.lane.b32.xlu0 %v219, 120
    %v233 = vpop.permute.xlu0 %232
    %234 = vrot.lane.b32.xlu0 %v204, 112
    %v235 = vpop.permute.xlu0 %234
    %236 = vrot.lane.b32.xlu0 %v209, 112
    %v237 = vpop.permute.xlu0 %236
    %238 = vrot.lane.b32.xlu0 %v214, 112
    %v239 = vpop.permute.xlu0 %238
    %240 = vrot.lane.b32.xlu0 %v219, 112
    %v241 = vpop.permute.xlu0 %240
    %242 = vrot.lane.b32.xlu0 %v204, 104
    %v243 = vpop.permute.xlu0 %242
    %244 = vrot.lane.b32.xlu0 %v209, 104
    %v245 = vpop.permute.xlu0 %244
    %246 = vrot.lane.b32.xlu0 %v214, 104
    %v247 = vpop.permute.xlu0 %246
    %248 = vrot.lane.b32.xlu0 %v219, 104
    %v249 = vpop.permute.xlu0 %248
    %250 = vrot.lane.b32.xlu0 %v204, 96
    %v251 = vpop.permute.xlu0 %250
    %252 = vrot.lane.b32.xlu0 %v209, 96
    %v253 = vpop.permute.xlu0 %252
    %vm254 = vcmask 64512
    %v255 = vsel %vm254, %v204, 0
    %v257 = vsel %vm254, %v209, 0
    %v259 = vsel %vm254, %v251, 0
    %v261 = vsel %vm254, %v253, 0
    %263 = vmatprep.subr.mxu0 0.0
    %264 = vmatpush1.xpose.msra.mxu0 %v259
    %265 = vmatprep.subr.mxu0 0.0
    %266 = vmatpush1.xpose.msra.mxu0 %v261
    %267 = vmatprep.subr.mxu0 0.0
    %268 = vmatpush1.xpose.msra.mxu0 0.0
    %269 = vmatprep.subr.mxu0 0.0
    %270 = vmatpush1.xpose.msra.mxu0 0.0
    %271 = vmatprep.subr.mxu0 0.0
    %272 = vmatpush1.xpose.msra.mxu0 0.0
    %273 = vmatprep.subr.mxu0 0.0
    %274 = vmatpush1.xpose.msra.mxu0 0.0
    %275 = vmatprep.subr.mxu0 0.0
    %276 = vmatpush1.xpose.msra.mxu0 0.0
    %277 = vmatprep.subr.mxu0 0.0
    %278 = vmatpush1.xpose.msra.mxu0 0.0
    %279 = vmatprep.subr.mxu0 0.0
    %280 = vmatpush1.xpose.msra.mxu0 0.0
    %281 = vmatprep.subr.mxu0 0.0
    %282 = vmatpush1.xpose.msra.mxu0 0.0
    %283 = vmatprep.subr.mxu0 0.0
    %284 = vmatpush1.xpose.msra.mxu0 0.0
    %285 = vmatprep.subr.mxu0 0.0
    %286 = vmatpush1.xpose.msra.mxu0 0.0
    %287 = vmatprep.subr.mxu0 0.0
    %288 = vmatpush1.xpose.msra.mxu0 0.0
    %289 = vmatprep.subr.mxu0 0.0
    %290 = vmatpush1.xpose.msra.mxu0 0.0
    %291 = vmatprep.subr.mxu0 0.0
    %292 = vmatpush1.xpose.msra.mxu0 0.0
    %293 = vmatprep.subr.mxu0 0.0
    %294 = vmatpush1.xpose.msra.mxu0 0.0
    %295 = vmatprep.subr.mxu0 0.0
    %296 = vmatpush1.xpose.msra.mxu0 0.0
    %297 = vmatprep.subr.mxu0 0.0
    %298 = vmatpush1.xpose.msra.mxu0 0.0
    %299 = vmatprep.subr.mxu0 0.0
    %300 = vmatpush1.xpose.msra.mxu0 0.0
    %301 = vmatprep.subr.mxu0 0.0
    %302 = vmatpush1.xpose.msra.mxu0 0.0
    %303 = vmatprep.subr.mxu0 0.0
    %304 = vmatpush1.xpose.msra.mxu0 0.0
    %305 = vmatprep.subr.mxu0 0.0
    %306 = vmatpush1.xpose.msra.mxu0 0.0
    %307 = vmatprep.subr.mxu0 0.0
    %308 = vmatpush1.xpose.msra.mxu0 0.0
    %309 = vmatprep.subr.mxu0 0.0
    %310 = vmatpush1.xpose.msra.mxu0 0.0
    %311 = vmatprep.subr.mxu0 0.0
    %312 = vmatpush1.xpose.msra.mxu0 0.0
    %313 = vmatprep.subr.mxu0 0.0
    %314 = vmatpush1.xpose.msra.mxu0 0.0
    %315 = vmatprep.subr.mxu0 0.0
    %316 = vmatpush1.xpose.msra.mxu0 0.0
    %317 = vmatprep.subr.mxu0 0.0
    %318 = vmatpush1.xpose.msra.mxu0 0.0
    %319 = vmatprep.subr.mxu0 0.0
    %320 = vmatpush1.xpose.msra.mxu0 0.0
    %321 = vmatprep.subr.mxu0 0.0
    %322 = vmatpush1.xpose.msra.mxu0 0.0
    %323 = vmatprep.subr.mxu0 0.0
    %324 = vmatpush1.xpose.msra.mxu0 0.0
    %325 = vmatprep.subr.mxu0 0.0
    %326 = vmatpush1.xpose.msra.mxu0 0.0
    %327 = vmatprep.mubr.f32.mxu0 0.0
    %328 = vmatmul.mubr.f32.gmra.mrb[0].mxu0 %v255
    %v329 = vpop.f32.mrb[0].mxu0
    %v330 = vadd.f32 0.0, %v329
    %v331 = vpop.f32.mrb[0].mxu0
    %332 = vmatprep.mubr.f32.mxu0 0.0
    %333 = vmatmul.mubr.f32.gmra.mrb[0].mxu0 %v257
    %v334 = vpop.f32.mrb[0].mxu0
    %v335 = vadd.f32 0.0, %v334
    %v336 = vpop.f32.mrb[0].mxu0
    %337 = vdwg.mxu0
    %338 = vrot.lane.b32.xlu0 %v214, 96
    %v339 = vpop.permute.xlu0 %338
    %340 = vrot.lane.b32.xlu0 %v219, 96
    %v341 = vpop.permute.xlu0 %340
    %v342 = vsel %vm254, %v214, 0
    %v344 = vsel %vm254, %v219, 0
    %v346 = vsel %vm254, %v339, 0
    %v348 = vsel %vm254, %v341, 0
    %350 = vmatprep.subr.mxu0 0.0
    %351 = vmatpush1.xpose.msra.mxu0 %v346
    %352 = vmatprep.subr.mxu0 0.0
    %353 = vmatpush1.xpose.msra.mxu0 %v348
    %354 = vmatprep.subr.mxu0 0.0
    %355 = vmatpush1.xpose.msra.mxu0 0.0
    %356 = vmatprep.subr.mxu0 0.0
    %357 = vmatpush1.xpose.msra.mxu0 0.0
    %358 = vmatprep.subr.mxu0 0.0
    %359 = vmatpush1.xpose.msra.mxu0 0.0
    %360 = vmatprep.subr.mxu0 0.0
    %361 = vmatpush1.xpose.msra.mxu0 0.0
    %362 = vmatprep.subr.mxu0 0.0
    %363 = vmatpush1.xpose.msra.mxu0 0.0
    %364 = vmatprep.subr.mxu0 0.0
    %365 = vmatpush1.xpose.msra.mxu0 0.0
    %366 = vmatprep.subr.mxu0 0.0
    %367 = vmatpush1.xpose.msra.mxu0 0.0
    %368 = vmatprep.subr.mxu0 0.0
    %369 = vmatpush1.xpose.msra.mxu0 0.0
    %370 = vmatprep.subr.mxu0 0.0
    %371 = vmatpush1.xpose.msra.mxu0 0.0
    %372 = vmatprep.subr.mxu0 0.0
    %373 = vmatpush1.xpose.msra.mxu0 0.0
    %374 = vmatprep.subr.mxu0 0.0
    %375 = vmatpush1.xpose.msra.mxu0 0.0
    %376 = vmatprep.subr.mxu0 0.0
    %377 = vmatpush1.xpose.msra.mxu0 0.0
    %378 = vmatprep.subr.mxu0 0.0
    %379 = vmatpush1.xpose.msra.mxu0 0.0
    %380 = vmatprep.subr.mxu0 0.0
    %381 = vmatpush1.xpose.msra.mxu0 0.0
    %382 = vmatprep.subr.mxu0 0.0
    %383 = vmatpush1.xpose.msra.mxu0 0.0
    %384 = vmatprep.subr.mxu0 0.0
    %385 = vmatpush1.xpose.msra.mxu0 0.0
    %386 = vmatprep.subr.mxu0 0.0
    %387 = vmatpush1.xpose.msra.mxu0 0.0
    %388 = vmatprep.subr.mxu0 0.0
    %389 = vmatpush1.xpose.msra.mxu0 0.0
    %390 = vmatprep.subr.mxu0 0.0
    %391 = vmatpush1.xpose.msra.mxu0 0.0
    %392 = vmatprep.subr.mxu0 0.0
    %393 = vmatpush1.xpose.msra.mxu0 0.0
    %394 = vmatprep.subr.mxu0 0.0
    %395 = vmatpush1.xpose.msra.mxu0 0.0
    %396 = vmatprep.subr.mxu0 0.0
    %397 = vmatpush1.xpose.msra.mxu0 0.0
    %398 = vmatprep.subr.mxu0 0.0
    %399 = vmatpush1.xpose.msra.mxu0 0.0
    %400 = vmatprep.subr.mxu0 0.0
    %401 = vmatpush1.xpose.msra.mxu0 0.0
    %402 = vmatprep.subr.mxu0 0.0
    %403 = vmatpush1.xpose.msra.mxu0 0.0
    %404 = vmatprep.subr.mxu0 0.0
    %405 = vmatpush1.xpose.msra.mxu0 0.0
    %406 = vmatprep.subr.mxu0 0.0
    %407 = vmatpush1.xpose.msra.mxu0 0.0
    %408 = vmatprep.subr.mxu0 0.0
    %409 = vmatpush1.xpose.msra.mxu0 0.0
    %410 = vmatprep.subr.mxu0 0.0
    %411 = vmatpush1.xpose.msra.mxu0 0.0
    %412 = vmatprep.subr.mxu0 0.0
    %413 = vmatpush1.xpose.msra.mxu0 0.0
    %414 = vmatprep.mubr.f32.mxu0 0.0
    %415 = vmatmul.mubr.f32.gmra.mrb[0].mxu0 %v342
    %v416 = vpop.f32.mrb[0].mxu0
    %v417 = vadd.f32 0.0, %v416
    %v418 = vpop.f32.mrb[0].mxu0
    %419 = vmatprep.mubr.f32.mxu0 0.0
    %420 = vmatmul.mubr.f32.gmra.mrb[0].mxu0 %v344
    %v421 = vpop.f32.mrb[0].mxu0
    %v422 = vadd.f32 0.0, %v421
    %v423 = vpop.f32.mrb[0].mxu0
    %424 = vdwg.mxu0
    %425 = vrot.lane.b32.xlu0 %v227, 96
    %v426 = vpop.permute.xlu0 %425
    %427 = vrot.lane.b32.xlu0 %v229, 96
    %v428 = vpop.permute.xlu0 %427
    %v429 = vsel %vm254, %v227, 0
    %v431 = vsel %vm254, %v229, 0
    %v433 = vsel %vm254, %v426, 0
    %v435 = vsel %vm254, %v428, 0
    %437 = vmatprep.subr.mxu0 0.0
    %438 = vmatpush1.xpose.msra.mxu0 %v433
    %439 = vmatprep.subr.mxu0 0.0
    %440 = vmatpush1.xpose.msra.mxu0 %v435
    %441 = vmatprep.subr.mxu0 0.0
    %442 = vmatpush1.xpose.msra.mxu0 0.0
    %443 = vmatprep.subr.mxu0 0.0
    %444 = vmatpush1.xpose.msra.mxu0 0.0
    %445 = vmatprep.subr.mxu0 0.0
    %446 = vmatpush1.xpose.msra.mxu0 0.0
    %447 = vmatprep.subr.mxu0 0.0
    %448 = vmatpush1.xpose.msra.mxu0 0.0
    %449 = vmatprep.subr.mxu0 0.0
    %450 = vmatpush1.xpose.msra.mxu0 0.0
    %451 = vmatprep.subr.mxu0 0.0
    %452 = vmatpush1.xpose.msra.mxu0 0.0
    %453 = vmatprep.subr.mxu0 0.0
    %454 = vmatpush1.xpose.msra.mxu0 0.0
    %455 = vmatprep.subr.mxu0 0.0
    %456 = vmatpush1.xpose.msra.mxu0 0.0
    %457 = vmatprep.subr.mxu0 0.0
    %458 = vmatpush1.xpose.msra.mxu0 0.0
    %459 = vmatprep.subr.mxu0 0.0
    %460 = vmatpush1.xpose.msra.mxu0 0.0
    %461 = vmatprep.subr.mxu0 0.0
    %462 = vmatpush1.xpose.msra.mxu0 0.0
    %463 = vmatprep.subr.mxu0 0.0
    %464 = vmatpush1.xpose.msra.mxu0 0.0
    %465 = vmatprep.subr.mxu0 0.0
    %466 = vmatpush1.xpose.msra.mxu0 0.0
    %467 = vmatprep.subr.mxu0 0.0
    %468 = vmatpush1.xpose.msra.mxu0 0.0
    %469 = vmatprep.subr.mxu0 0.0
    %470 = vmatpush1.xpose.msra.mxu0 0.0
    %471 = vmatprep.subr.mxu0 0.0
    %472 = vmatpush1.xpose.msra.mxu0 0.0
    %473 = vmatprep.subr.mxu0 0.0
    %474 = vmatpush1.xpose.msra.mxu0 0.0
    %475 = vmatprep.subr.mxu0 0.0
    %476 = vmatpush1.xpose.msra.mxu0 0.0
    %477 = vmatprep.subr.mxu0 0.0
    %478 = vmatpush1.xpose.msra.mxu0 0.0
    %479 = vmatprep.subr.mxu0 0.0
    %480 = vmatpush1.xpose.msra.mxu0 0.0
    %481 = vmatprep.subr.mxu0 0.0
    %482 = vmatpush1.xpose.msra.mxu0 0.0
    %483 = vmatprep.subr.mxu0 0.0
    %484 = vmatpush1.xpose.msra.mxu0 0.0
    %485 = vmatprep.subr.mxu0 0.0
    %486 = vmatpush1.xpose.msra.mxu0 0.0
    %487 = vmatprep.subr.mxu0 0.0
    %488 = vmatpush1.xpose.msra.mxu0 0.0
    %489 = vmatprep.subr.mxu0 0.0
    %490 = vmatpush1.xpose.msra.mxu0 0.0
    %491 = vmatprep.subr.mxu0 0.0
    %492 = vmatpush1.xpose.msra.mxu0 0.0
    %493 = vmatprep.subr.mxu0 0.0
    %494 = vmatpush1.xpose.msra.mxu0 0.0
    %495 = vmatprep.subr.mxu0 0.0
    %496 = vmatpush1.xpose.msra.mxu0 0.0
    %497 = vmatprep.subr.mxu0 0.0
    %498 = vmatpush1.xpose.msra.mxu0 0.0
    %499 = vmatprep.subr.mxu0 0.0
    %500 = vmatpush1.xpose.msra.mxu0 0.0
    %501 = vmatprep.mubr.f32.mxu0 0.0
    %502 = vmatmul.mubr.f32.gmra.mrb[0].mxu0 %v429
    %v503 = vpop.f32.mrb[0].mxu0
    %v504 = vadd.f32 0.0, %v503
    %v505 = vpop.f32.mrb[0].mxu0
    %506 = vmatprep.mubr.f32.mxu0 0.0
    %507 = vmatmul.mubr.f32.gmra.mrb[0].mxu0 %v431
    %v508 = vpop.f32.mrb[0].mxu0
    %v509 = vadd.f32 0.0, %v508
    %v510 = vpop.f32.mrb[0].mxu0
    %511 = vdwg.mxu0
    %512 = vrot.lane.b32.xlu0 %v231, 96
    %v513 = vpop.permute.xlu0 %512
    %514 = vrot.lane.b32.xlu0 %v233, 96
    %v515 = vpop.permute.xlu0 %514
    %v516 = vsel %vm254, %v231, 0
    %v518 = vsel %vm254, %v233, 0
    %v520 = vsel %vm254, %v513, 0
    %v522 = vsel %vm254, %v515, 0
    %524 = vmatprep.subr.mxu0 0.0
    %525 = vmatpush1.xpose.msra.mxu0 %v520
    %526 = vmatprep.subr.mxu0 0.0
    %527 = vmatpush1.xpose.msra.mxu0 %v522
    %528 = vmatprep.subr.mxu0 0.0
    %529 = vmatpush1.xpose.msra.mxu0 0.0
    %530 = vmatprep.subr.mxu0 0.0
    %531 = vmatpush1.xpose.msra.mxu0 0.0
    %532 = vmatprep.subr.mxu0 0.0
    %533 = vmatpush1.xpose.msra.mxu0 0.0
    %534 = vmatprep.subr.mxu0 0.0
    %535 = vmatpush1.xpose.msra.mxu0 0.0
    %536 = vmatprep.subr.mxu0 0.0
    %537 = vmatpush1.xpose.msra.mxu0 0.0
    %538 = vmatprep.subr.mxu0 0.0
    %539 = vmatpush1.xpose.msra.mxu0 0.0
    %540 = vmatprep.subr.mxu0 0.0
    %541 = vmatpush1.xpose.msra.mxu0 0.0
    %542 = vmatprep.subr.mxu0 0.0
    %543 = vmatpush1.xpose.msra.mxu0 0.0
    %544 = vmatprep.subr.mxu0 0.0
    %545 = vmatpush1.xpose.msra.mxu0 0.0
    %546 = vmatprep.subr.mxu0 0.0
    %547 = vmatpush1.xpose.msra.mxu0 0.0
    %548 = vmatprep.subr.mxu0 0.0
    %549 = vmatpush1.xpose.msra.mxu0 0.0
    %550 = vmatprep.subr.mxu0 0.0
    %551 = vmatpush1.xpose.msra.mxu0 0.0
    %552 = vmatprep.subr.mxu0 0.0
    %553 = vmatpush1.xpose.msra.mxu0 0.0
    %554 = vmatprep.subr.mxu0 0.0
    %555 = vmatpush1.xpose.msra.mxu0 0.0
    %556 = vmatprep.subr.mxu0 0.0
    %557 = vmatpush1.xpose.msra.mxu0 0.0
    %558 = vmatprep.subr.mxu0 0.0
    %559 = vmatpush1.xpose.msra.mxu0 0.0
    %560 = vmatprep.subr.mxu0 0.0
    %561 = vmatpush1.xpose.msra.mxu0 0.0
    %562 = vmatprep.subr.mxu0 0.0
    %563 = vmatpush1.xpose.msra.mxu0 0.0
    %564 = vmatprep.subr.mxu0 0.0
    %565 = vmatpush1.xpose.msra.mxu0 0.0
    %566 = vmatprep.subr.mxu0 0.0
    %567 = vmatpush1.xpose.msra.mxu0 0.0
    %568 = vmatprep.subr.mxu0 0.0
    %569 = vmatpush1.xpose.msra.mxu0 0.0
    %570 = vmatprep.subr.mxu0 0.0
    %571 = vmatpush1.xpose.msra.mxu0 0.0
    %572 = vmatprep.subr.mxu0 0.0
    %573 = vmatpush1.xpose.msra.mxu0 0.0
    %574 = vmatprep.subr.mxu0 0.0
    %575 = vmatpush1.xpose.msra.mxu0 0.0
    %576 = vmatprep.subr.mxu0 0.0
    %577 = vmatpush1.xpose.msra.mxu0 0.0
    %578 = vmatprep.subr.mxu0 0.0
    %579 = vmatpush1.xpose.msra.mxu0 0.0
    %580 = vmatprep.subr.mxu0 0.0
    %581 = vmatpush1.xpose.msra.mxu0 0.0
    %582 = vmatprep.subr.mxu0 0.0
    %583 = vmatpush1.xpose.msra.mxu0 0.0
    %584 = vmatprep.subr.mxu0 0.0
    %585 = vmatpush1.xpose.msra.mxu0 0.0
    %586 = vmatprep.subr.mxu0 0.0
    %587 = vmatpush1.xpose.msra.mxu0 0.0
    %588 = vmatprep.mubr.f32.mxu0 0.0
    %589 = vmatmul.mubr.f32.gmra.mrb[0].mxu0 %v516
    %v590 = vpop.f32.mrb[0].mxu0
    %v591 = vadd.f32 0.0, %v590
    %v592 = vpop.f32.mrb[0].mxu0
    %593 = vmatprep.mubr.f32.mxu0 0.0
    %594 = vmatmul.mubr.f32.gmra.mrb[0].mxu0 %v518
    %v595 = vpop.f32.mrb[0].mxu0
    %v596 = vadd.f32 0.0, %v595
    %v597 = vpop.f32.mrb[0].mxu0
    %598 = vdwg.mxu0
    %599 = vrot.lane.b32.xlu0 %v235, 96
    %v600 = vpop.permute.xlu0 %599
    %601 = vrot.lane.b32.xlu0 %v237, 96
    %v602 = vpop.permute.xlu0 %601
    %v603 = vsel %vm254, %v235, 0
    %v605 = vsel %vm254, %v237, 0
    %v607 = vsel %vm254, %v600, 0
    %v609 = vsel %vm254, %v602, 0
    %611 = vmatprep.subr.mxu0 0.0
    %612 = vmatpush1.xpose.msra.mxu0 %v607
    %613 = vmatprep.subr.mxu0 0.0
    %614 = vmatpush1.xpose.msra.mxu0 %v609
    %615 = vmatprep.subr.mxu0 0.0
    %616 = vmatpush1.xpose.msra.mxu0 0.0
    %617 = vmatprep.subr.mxu0 0.0
    %618 = vmatpush1.xpose.msra.mxu0 0.0
    %619 = vmatprep.subr.mxu0 0.0
    %620 = vmatpush1.xpose.msra.mxu0 0.0
    %621 = vmatprep.subr.mxu0 0.0
    %622 = vmatpush1.xpose.msra.mxu0 0.0
    %623 = vmatprep.subr.mxu0 0.0
    %624 = vmatpush1.xpose.msra.mxu0 0.0
    %625 = vmatprep.subr.mxu0 0.0
    %626 = vmatpush1.xpose.msra.mxu0 0.0
    %627 = vmatprep.subr.mxu0 0.0
    %628 = vmatpush1.xpose.msra.mxu0 0.0
    %629 = vmatprep.subr.mxu0 0.0
    %630 = vmatpush1.xpose.msra.mxu0 0.0
    %631 = vmatprep.subr.mxu0 0.0
    %632 = vmatpush1.xpose.msra.mxu0 0.0
    %633 = vmatprep.subr.mxu0 0.0
    %634 = vmatpush1.xpose.msra.mxu0 0.0
    %635 = vmatprep.subr.mxu0 0.0
    %636 = vmatpush1.xpose.msra.mxu0 0.0
    %637 = vmatprep.subr.mxu0 0.0
    %638 = vmatpush1.xpose.msra.mxu0 0.0
    %639 = vmatprep.subr.mxu0 0.0
    %640 = vmatpush1.xpose.msra.mxu0 0.0
    %641 = vmatprep.subr.mxu0 0.0
    %642 = vmatpush1.xpose.msra.mxu0 0.0
    %643 = vmatprep.subr.mxu0 0.0
    %644 = vmatpush1.xpose.msra.mxu0 0.0
    %645 = vmatprep.subr.mxu0 0.0
    %646 = vmatpush1.xpose.msra.mxu0 0.0
    %647 = vmatprep.subr.mxu0 0.0
    %648 = vmatpush1.xpose.msra.mxu0 0.0
    %649 = vmatprep.subr.mxu0 0.0
    %650 = vmatpush1.xpose.msra.mxu0 0.0
    %651 = vmatprep.subr.mxu0 0.0
    %652 = vmatpush1.xpose.msra.mxu0 0.0
    %653 = vmatprep.subr.mxu0 0.0
    %654 = vmatpush1.xpose.msra.mxu0 0.0
    %655 = vmatprep.subr.mxu0 0.0
    %656 = vmatpush1.xpose.msra.mxu0 0.0
    %657 = vmatprep.subr.mxu0 0.0
    %658 = vmatpush1.xpose.msra.mxu0 0.0
    %659 = vmatprep.subr.mxu0 0.0
    %660 = vmatpush1.xpose.msra.mxu0 0.0
    %661 = vmatprep.subr.mxu0 0.0
    %662 = vmatpush1.xpose.msra.mxu0 0.0
    %663 = vmatprep.subr.mxu0 0.0
    %664 = vmatpush1.xpose.msra.mxu0 0.0
    %665 = vmatprep.subr.mxu0 0.0
    %666 = vmatpush1.xpose.msra.mxu0 0.0
    %667 = vmatprep.subr.mxu0 0.0
    %668 = vmatpush1.xpose.msra.mxu0 0.0
    %669 = vmatprep.subr.mxu0 0.0
    %670 = vmatpush1.xpose.msra.mxu0 0.0
    %671 = vmatprep.subr.mxu0 0.0
    %672 = vmatpush1.xpose.msra.mxu0 0.0
    %673 = vmatprep.subr.mxu0 0.0
    %674 = vmatpush1.xpose.msra.mxu0 0.0
    %675 = vmatprep.mubr.f32.mxu0 0.0
    %676 = vmatmul.mubr.f32.gmra.mrb[0].mxu0 %v603
    %v677 = vpop.f32.mrb[0].mxu0
    %v678 = vadd.f32 0.0, %v677
    %v679 = vpop.f32.mrb[0].mxu0
    %680 = vmatprep.mubr.f32.mxu0 0.0
    %681 = vmatmul.mubr.f32.gmra.mrb[0].mxu0 %v605
    %v682 = vpop.f32.mrb[0].mxu0
    %v683 = vadd.f32 0.0, %v682
    %v684 = vpop.f32.mrb[0].mxu0
    %685 = vdwg.mxu0
    %686 = vrot.lane.b32.xlu0 %v239, 96
    %v687 = vpop.permute.xlu0 %686
    %688 = vrot.lane.b32.xlu0 %v241, 96
    %v689 = vpop.permute.xlu0 %688
    %v690 = vsel %vm254, %v239, 0
    %v692 = vsel %vm254, %v241, 0
    %v694 = vsel %vm254, %v687, 0
    %v696 = vsel %vm254, %v689, 0
    %698 = vmatprep.subr.mxu0 0.0
    %699 = vmatpush1.xpose.msra.mxu0 %v694
    %700 = vmatprep.subr.mxu0 0.0
    %701 = vmatpush1.xpose.msra.mxu0 %v696
    %702 = vmatprep.subr.mxu0 0.0
    %703 = vmatpush1.xpose.msra.mxu0 0.0
    %704 = vmatprep.subr.mxu0 0.0
    %705 = vmatpush1.xpose.msra.mxu0 0.0
    %706 = vmatprep.subr.mxu0 0.0
    %707 = vmatpush1.xpose.msra.mxu0 0.0
    %708 = vmatprep.subr.mxu0 0.0
    %709 = vmatpush1.xpose.msra.mxu0 0.0
    %710 = vmatprep.subr.mxu0 0.0
    %711 = vmatpush1.xpose.msra.mxu0 0.0
    %712 = vmatprep.subr.mxu0 0.0
    %713 = vmatpush1.xpose.msra.mxu0 0.0
    %714 = vmatprep.subr.mxu0 0.0
    %715 = vmatpush1.xpose.msra.mxu0 0.0
    %716 = vmatprep.subr.mxu0 0.0
    %717 = vmatpush1.xpose.msra.mxu0 0.0
    %718 = vmatprep.subr.mxu0 0.0
    %719 = vmatpush1.xpose.msra.mxu0 0.0
    %720 = vmatprep.subr.mxu0 0.0
    %721 = vmatpush1.xpose.msra.mxu0 0.0
    %722 = vmatprep.subr.mxu0 0.0
    %723 = vmatpush1.xpose.msra.mxu0 0.0
    %724 = vmatprep.subr.mxu0 0.0
    %725 = vmatpush1.xpose.msra.mxu0 0.0
    %726 = vmatprep.subr.mxu0 0.0
    %727 = vmatpush1.xpose.msra.mxu0 0.0
    %728 = vmatprep.subr.mxu0 0.0
    %729 = vmatpush1.xpose.msra.mxu0 0.0
    %730 = vmatprep.subr.mxu0 0.0
    %731 = vmatpush1.xpose.msra.mxu0 0.0
    %732 = vmatprep.subr.mxu0 0.0
    %733 = vmatpush1.xpose.msra.mxu0 0.0
    %734 = vmatprep.subr.mxu0 0.0
    %735 = vmatpush1.xpose.msra.mxu0 0.0
    %736 = vmatprep.subr.mxu0 0.0
    %737 = vmatpush1.xpose.msra.mxu0 0.0
    %738 = vmatprep.subr.mxu0 0.0
    %739 = vmatpush1.xpose.msra.mxu0 0.0
    %740 = vmatprep.subr.mxu0 0.0
    %741 = vmatpush1.xpose.msra.mxu0 0.0
    %742 = vmatprep.subr.mxu0 0.0
    %743 = vmatpush1.xpose.msra.mxu0 0.0
    %744 = vmatprep.subr.mxu0 0.0
    %745 = vmatpush1.xpose.msra.mxu0 0.0
    %746 = vmatprep.subr.mxu0 0.0
    %747 = vmatpush1.xpose.msra.mxu0 0.0
    %748 = vmatprep.subr.mxu0 0.0
    %749 = vmatpush1.xpose.msra.mxu0 0.0
    %750 = vmatprep.subr.mxu0 0.0
    %751 = vmatpush1.xpose.msra.mxu0 0.0
    %752 = vmatprep.subr.mxu0 0.0
    %753 = vmatpush1.xpose.msra.mxu0 0.0
    %754 = vmatprep.subr.mxu0 0.0
    %755 = vmatpush1.xpose.msra.mxu0 0.0
    %756 = vmatprep.subr.mxu0 0.0
    %757 = vmatpush1.xpose.msra.mxu0 0.0
    %758 = vmatprep.subr.mxu0 0.0
    %759 = vmatpush1.xpose.msra.mxu0 0.0
    %760 = vmatprep.subr.mxu0 0.0
    %761 = vmatpush1.xpose.msra.mxu0 0.0
    %762 = vmatprep.mubr.f32.mxu0 0.0
    %763 = vmatmul.mubr.f32.gmra.mrb[0].mxu0 %v690
    %v764 = vpop.f32.mrb[0].mxu0
    %v765 = vadd.f32 0.0, %v764
    %v766 = vpop.f32.mrb[0].mxu0
    %767 = vmatprep.mubr.f32.mxu0 0.0
    %768 = vmatmul.mubr.f32.gmra.mrb[0].mxu0 %v692
    %v769 = vpop.f32.mrb[0].mxu0
    %v770 = vadd.f32 0.0, %v769
    %v771 = vpop.f32.mrb[0].mxu0
    %772 = vdwg.mxu0
    %773 = vrot.lane.b32.xlu0 %v243, 96
    %v774 = vpop.permute.xlu0 %773
    %775 = vrot.lane.b32.xlu0 %v245, 96
    %v776 = vpop.permute.xlu0 %775
    %v777 = vsel %vm254, %v243, 0
    %v779 = vsel %vm254, %v245, 0
    %v781 = vsel %vm254, %v774, 0
    %v783 = vsel %vm254, %v776, 0
    %785 = vmatprep.subr.mxu0 0.0
    %786 = vmatpush1.xpose.msra.mxu0 %v781
    %787 = vmatprep.subr.mxu0 0.0
    %788 = vmatpush1.xpose.msra.mxu0 %v783
    %789 = vmatprep.subr.mxu0 0.0
    %790 = vmatpush1.xpose.msra.mxu0 0.0
    %791 = vmatprep.subr.mxu0 0.0
    %792 = vmatpush1.xpose.msra.mxu0 0.0
    %793 = vmatprep.subr.mxu0 0.0
    %794 = vmatpush1.xpose.msra.mxu0 0.0
    %795 = vmatprep.subr.mxu0 0.0
    %796 = vmatpush1.xpose.msra.mxu0 0.0
    %797 = vmatprep.subr.mxu0 0.0
    %798 = vmatpush1.xpose.msra.mxu0 0.0
    %799 = vmatprep.subr.mxu0 0.0
    %800 = vmatpush1.xpose.msra.mxu0 0.0
    %801 = vmatprep.subr.mxu0 0.0
    %802 = vmatpush1.xpose.msra.mxu0 0.0
    %803 = vmatprep.subr.mxu0 0.0
    %804 = vmatpush1.xpose.msra.mxu0 0.0
    %805 = vmatprep.subr.mxu0 0.0
    %806 = vmatpush1.xpose.msra.mxu0 0.0
    %807 = vmatprep.subr.mxu0 0.0
    %808 = vmatpush1.xpose.msra.mxu0 0.0
    %809 = vmatprep.subr.mxu0 0.0
    %810 = vmatpush1.xpose.msra.mxu0 0.0
    %811 = vmatprep.subr.mxu0 0.0
    %812 = vmatpush1.xpose.msra.mxu0 0.0
    %813 = vmatprep.subr.mxu0 0.0
    %814 = vmatpush1.xpose.msra.mxu0 0.0
    %815 = vmatprep.subr.mxu0 0.0
    %816 = vmatpush1.xpose.msra.mxu0 0.0
    %817 = vmatprep.subr.mxu0 0.0
    %818 = vmatpush1.xpose.msra.mxu0 0.0
    %819 = vmatprep.subr.mxu0 0.0
    %820 = vmatpush1.xpose.msra.mxu0 0.0
    %821 = vmatprep.subr.mxu0 0.0
    %822 = vmatpush1.xpose.msra.mxu0 0.0
    %823 = vmatprep.subr.mxu0 0.0
    %824 = vmatpush1.xpose.msra.mxu0 0.0
    %825 = vmatprep.subr.mxu0 0.0
    %826 = vmatpush1.xpose.msra.mxu0 0.0
    %827 = vmatprep.subr.mxu0 0.0
    %828 = vmatpush1.xpose.msra.mxu0 0.0
    %829 = vmatprep.subr.mxu0 0.0
    %830 = vmatpush1.xpose.msra.mxu0 0.0
    %831 = vmatprep.subr.mxu0 0.0
    %832 = vmatpush1.xpose.msra.mxu0 0.0
    %833 = vmatprep.subr.mxu0 0.0
    %834 = vmatpush1.xpose.msra.mxu0 0.0
    %835 = vmatprep.subr.mxu0 0.0
    %836 = vmatpush1.xpose.msra.mxu0 0.0
    %837 = vmatprep.subr.mxu0 0.0
    %838 = vmatpush1.xpose.msra.mxu0 0.0
    %839 = vmatprep.subr.mxu0 0.0
    %840 = vmatpush1.xpose.msra.mxu0 0.0
    %841 = vmatprep.subr.mxu0 0.0
    %842 = vmatpush1.xpose.msra.mxu0 0.0
    %843 = vmatprep.subr.mxu0 0.0
    %844 = vmatpush1.xpose.msra.mxu0 0.0
    %845 = vmatprep.subr.mxu0 0.0
    %846 = vmatpush1.xpose.msra.mxu0 0.0
    %847 = vmatprep.subr.mxu0 0.0
    %848 = vmatpush1.xpose.msra.mxu0 0.0
    %849 = vmatprep.mubr.f32.mxu0 0.0
    %850 = vmatmul.mubr.f32.gmra.mrb[0].mxu0 %v777
    %v851 = vpop.f32.mrb[0].mxu0
    %v852 = vadd.f32 0.0, %v851
    %v853 = vpop.f32.mrb[0].mxu0
    %854 = vmatprep.mubr.f32.mxu0 0.0
    %855 = vmatmul.mubr.f32.gmra.mrb[0].mxu0 %v779
    %v856 = vpop.f32.mrb[0].mxu0
    %v857 = vadd.f32 0.0, %v856
    %v858 = vpop.f32.mrb[0].mxu0
    %859 = vdwg.mxu0
    %860 = vrot.lane.b32.xlu0 %v247, 96
    %v861 = vpop.permute.xlu0 %860
    %862 = vrot.lane.b32.xlu0 %v249, 96
    %v863 = vpop.permute.xlu0 %862
    %v864 = vsel %vm254, %v247, 0
    %v866 = vsel %vm254, %v249, 0
    %v868 = vsel %vm254, %v861, 0
    %v870 = vsel %vm254, %v863, 0
    %872 = vmatprep.subr.mxu0 0.0
    %873 = vmatpush1.xpose.msra.mxu0 %v868
    %874 = vmatprep.subr.mxu0 0.0
    %875 = vmatpush1.xpose.msra.mxu0 %v870
    %876 = vmatprep.subr.mxu0 0.0
    %877 = vmatpush1.xpose.msra.mxu0 0.0
    %878 = vmatprep.subr.mxu0 0.0
    %879 = vmatpush1.xpose.msra.mxu0 0.0
    %880 = vmatprep.subr.mxu0 0.0
    %881 = vmatpush1.xpose.msra.mxu0 0.0
    %882 = vmatprep.subr.mxu0 0.0
    %883 = vmatpush1.xpose.msra.mxu0 0.0
    %884 = vmatprep.subr.mxu0 0.0
    %885 = vmatpush1.xpose.msra.mxu0 0.0
    %886 = vmatprep.subr.mxu0 0.0
    %887 = vmatpush1.xpose.msra.mxu0 0.0
    %888 = vmatprep.subr.mxu0 0.0
    %889 = vmatpush1.xpose.msra.mxu0 0.0
    %890 = vmatprep.subr.mxu0 0.0
    %891 = vmatpush1.xpose.msra.mxu0 0.0
    %892 = vmatprep.subr.mxu0 0.0
    %893 = vmatpush1.xpose.msra.mxu0 0.0
    %894 = vmatprep.subr.mxu0 0.0
    %895 = vmatpush1.xpose.msra.mxu0 0.0
    %896 = vmatprep.subr.mxu0 0.0
    %897 = vmatpush1.xpose.msra.mxu0 0.0
    %898 = vmatprep.subr.mxu0 0.0
    %899 = vmatpush1.xpose.msra.mxu0 0.0
    %900 = vmatprep.subr.mxu0 0.0
    %901 = vmatpush1.xpose.msra.mxu0 0.0
    %902 = vmatprep.subr.mxu0 0.0
    %903 = vmatpush1.xpose.msra.mxu0 0.0
    %904 = vmatprep.subr.mxu0 0.0
    %905 = vmatpush1.xpose.msra.mxu0 0.0
    %906 = vmatprep.subr.mxu0 0.0
    %907 = vmatpush1.xpose.msra.mxu0 0.0
    %908 = vmatprep.subr.mxu0 0.0
    %909 = vmatpush1.xpose.msra.mxu0 0.0
    %910 = vmatprep.subr.mxu0 0.0
    %911 = vmatpush1.xpose.msra.mxu0 0.0
    %912 = vmatprep.subr.mxu0 0.0
    %913 = vmatpush1.xpose.msra.mxu0 0.0
    %914 = vmatprep.subr.mxu0 0.0
    %915 = vmatpush1.xpose.msra.mxu0 0.0
    %916 = vmatprep.subr.mxu0 0.0
    %917 = vmatpush1.xpose.msra.mxu0 0.0
    %918 = vmatprep.subr.mxu0 0.0
    %919 = vmatpush1.xpose.msra.mxu0 0.0
    %920 = vmatprep.subr.mxu0 0.0
    %921 = vmatpush1.xpose.msra.mxu0 0.0
    %922 = vmatprep.subr.mxu0 0.0
    %923 = vmatpush1.xpose.msra.mxu0 0.0
    %924 = vmatprep.subr.mxu0 0.0
    %925 = vmatpush1.xpose.msra.mxu0 0.0
    %926 = vmatprep.subr.mxu0 0.0
    %927 = vmatpush1.xpose.msra.mxu0 0.0
    %928 = vmatprep.subr.mxu0 0.0
    %929 = vmatpush1.xpose.msra.mxu0 0.0
    %930 = vmatprep.subr.mxu0 0.0
    %931 = vmatpush1.xpose.msra.mxu0 0.0
    %932 = vmatprep.subr.mxu0 0.0
    %933 = vmatpush1.xpose.msra.mxu0 0.0
    %934 = vmatprep.subr.mxu0 0.0
    %935 = vmatpush1.xpose.msra.mxu0 0.0
    %936 = vmatprep.mubr.f32.mxu0 0.0
    %937 = vmatmul.mubr.f32.gmra.mrb[0].mxu0 %v864
    %v938 = vpop.f32.mrb[0].mxu0
    %v939 = vadd.f32 0.0, %v938
    %v940 = vpop.f32.mrb[0].mxu0
    %941 = vmatprep.mubr.f32.mxu0 0.0
    %942 = vmatmul.mubr.f32.gmra.mrb[0].mxu0 %v866
    %v943 = vpop.f32.mrb[0].mxu0
    %v944 = vadd.f32 0.0, %v943
    %v945 = vpop.f32.mrb[0].mxu0
    %946 = vdwg.mxu0
    %vm947 = vcmask 130048
    %v948 = vsel %vm947, %v330, -inf
    %949 = vmax.xlane.f32.xlu0 %v948
    %v950 = vpop.xlane.xlu0 %949
    %v951 = vsel %vm947, %v335, -inf
    %952 = vmax.xlane.f32.xlu0 %v951
    %v953 = vpop.xlane.xlu0 %952
    %v954 = vsel %vm947, %v417, -inf
    %955 = vmax.xlane.f32.xlu0 %v954
    %v956 = vpop.xlane.xlu0 %955
    %v957 = vsel %vm947, %v422, -inf
    %958 = vmax.xlane.f32.xlu0 %v957
    %v959 = vpop.xlane.xlu0 %958
    %v960 = vsel %vm947, %v504, -inf
    %961 = vmax.xlane.f32.xlu0 %v960
    %v962 = vpop.xlane.xlu0 %961
    %v963 = vsel %vm947, %v509, -inf
    %964 = vmax.xlane.f32.xlu0 %v963
    %v965 = vpop.xlane.xlu0 %964
    %v966 = vsel %vm947, %v591, -inf
    %967 = vmax.xlane.f32.xlu0 %v966
    %v968 = vpop.xlane.xlu0 %967
    %v969 = vsel %vm947, %v596, -inf
    %970 = vmax.xlane.f32.xlu0 %v969
    %v971 = vpop.xlane.xlu0 %970
    %v972 = vsel %vm947, %v678, -inf
    %973 = vmax.xlane.f32.xlu0 %v972
    %v974 = vpop.xlane.xlu0 %973
    %v975 = vsel %vm947, %v683, -inf
    %976 = vmax.xlane.f32.xlu0 %v975
    %v977 = vpop.xlane.xlu0 %976
    %v978 = vsel %vm947, %v765, -inf
    %979 = vmax.xlane.f32.xlu0 %v978
    %v980 = vpop.xlane.xlu0 %979
    %v981 = vsel %vm947, %v770, -inf
    %982 = vmax.xlane.f32.xlu0 %v981
    %v983 = vpop.xlane.xlu0 %982
    %v984 = vsel %vm947, %v852, -inf
    %985 = vmax.xlane.f32.xlu0 %v984
    %v986 = vpop.xlane.xlu0 %985
    %v987 = vsel %vm947, %v857, -inf
    %988 = vmax.xlane.f32.xlu0 %v987
    %v989 = vpop.xlane.xlu0 %988
    %v990 = vsel %vm947, %v939, -inf
    %991 = vmax.xlane.f32.xlu0 %v990
    %v992 = vpop.xlane.xlu0 %991
    %v993 = vsel %vm947, %v944, -inf
    %994 = vmax.xlane.f32.xlu0 %v993
    %v995 = vpop.xlane.xlu0 %994
    %v996 = vsub.f32 %v330, %v950
    %v997 = vsub.f32 %v335, %v953
    %v998 = vsub.f32 %v417, %v956
    %v999 = vsub.f32 %v422, %v959
    %v1000 = vsub.f32 %v504, %v962
    %v1001 = vsub.f32 %v509, %v965
    %v1002 = vsub.f32 %v591, %v968
    %v1003 = vsub.f32 %v596, %v971
    %v1004 = vsub.f32 %v678, %v974
    %v1005 = vsub.f32 %v683, %v977
    %v1006 = vsub.f32 %v765, %v980
    %v1007 = vsub.f32 %v770, %v983
    %v1008 = vsub.f32 %v852, %v986
    %v1009 = vsub.f32 %v857, %v989
    %v1010 = vsub.f32 %v939, %v992
    %v1011 = vsub.f32 %v944, %v995
    %v1012 = vmul.f32 %v996, 1.442695
    %v1013 = vpow.pop %v1012
    %v1014 = vmul.f32 %v997, 1.442695
    %v1015 = vpow.pop %v1014
    %v1016 = vmul.f32 %v998, 1.442695
    %v1017 = vpow.pop %v1016
    %v1018 = vmul.f32 %v999, 1.442695
    %v1019 = vpow.pop %v1018
    %v1020 = vmul.f32 %v1000, 1.442695
    %v1021 = vpow.pop %v1020
    %v1022 = vmul.f32 %v1001, 1.442695
    %v1023 = vpow.pop %v1022
    %v1024 = vmul.f32 %v1002, 1.442695
    %v1025 = vpow.pop %v1024
    %v1026 = vmul.f32 %v1003, 1.442695
    %v1027 = vpow.pop %v1026
    %v1028 = vmul.f32 %v1004, 1.442695
    %v1029 = vpow.pop %v1028
    %v1030 = vmul.f32 %v1005, 1.442695
    %v1031 = vpow.pop %v1030
    %v1032 = vmul.f32 %v1006, 1.442695
    %v1033 = vpow.pop %v1032
    %v1034 = vmul.f32 %v1007, 1.442695
    %v1035 = vpow.pop %v1034
    %v1036 = vmul.f32 %v1008, 1.442695
    %v1037 = vpow.pop %v1036
    %v1038 = vmul.f32 %v1009, 1.442695
    %v1039 = vpow.pop %v1038
    %v1040 = vmul.f32 %v1010, 1.442695
    %v1041 = vpow.pop %v1040
    %v1042 = vmul.f32 %v1011, 1.442695
    %v1043 = vpow.pop %v1042
    %v1044 = vsel %vm947, %v1013, 0.0
    %1045 = vadd.xlane.f32.xlu0 %v1044
    %v1046 = vpop.xlane.xlu0 %1045
    %v1047 = vsel %vm947, %v1015, 0.0
    %1048 = vadd.xlane.f32.xlu0 %v1047
    %v1049 = vpop.xlane.xlu0 %1048
    %v1050 = vsel %vm947, %v1017, 0.0
    %1051 = vadd.xlane.f32.xlu0 %v1050
    %v1052 = vpop.xlane.xlu0 %1051
    %v1053 = vsel %vm947, %v1019, 0.0
    %1054 = vadd.xlane.f32.xlu0 %v1053
    %v1055 = vpop.xlane.xlu0 %1054
    %v1056 = vsel %vm947, %v1021, 0.0
    %1057 = vadd.xlane.f32.xlu0 %v1056
    %v1058 = vpop.xlane.xlu0 %1057
    %v1059 = vsel %vm947, %v1023, 0.0
    %1060 = vadd.xlane.f32.xlu0 %v1059
    %v1061 = vpop.xlane.xlu0 %1060
    %v1062 = vsel %vm947, %v1025, 0.0
    %1063 = vadd.xlane.f32.xlu0 %v1062
    %v1064 = vpop.xlane.xlu0 %1063
    %v1065 = vsel %vm947, %v1027, 0.0
    %1066 = vadd.xlane.f32.xlu0 %v1065
    %v1067 = vpop.xlane.xlu0 %1066
    %v1068 = vsel %vm947, %v1029, 0.0
    %1069 = vadd.xlane.f32.xlu0 %v1068
    %v1070 = vpop.xlane.xlu0 %1069
    %v1071 = vsel %vm947, %v1031, 0.0
    %1072 = vadd.xlane.f32.xlu0 %v1071
    %v1073 = vpop.xlane.xlu0 %1072
    %v1074 = vsel %vm947, %v1033, 0.0
    %1075 = vadd.xlane.f32.xlu0 %v1074
    %v1076 = vpop.xlane.xlu0 %1075
    %v1077 = vsel %vm947, %v1035, 0.0
    %1078 = vadd.xlane.f32.xlu0 %v1077
    %v1079 = vpop.xlane.xlu0 %1078
    %v1080 = vsel %vm947, %v1037, 0.0
    %1081 = vadd.xlane.f32.xlu0 %v1080
    %v1082 = vpop.xlane.xlu0 %1081
    %v1083 = vsel %vm947, %v1039, 0.0
    %1084 = vadd.xlane.f32.xlu0 %v1083
    %v1085 = vpop.xlane.xlu0 %1084
    %v1086 = vsel %vm947, %v1041, 0.0
    %1087 = vadd.xlane.f32.xlu0 %v1086
    %v1088 = vpop.xlane.xlu0 %1087
    %v1089 = vsel %vm947, %v1043, 0.0
    %1090 = vadd.xlane.f32.xlu0 %v1089
    %v1091 = vpop.xlane.xlu0 %1090
    %v1092 = vrcp.pop %v1046
    %v1093 = vrcp.pop %v1049
    %v1094 = vrcp.pop %v1052
    %v1095 = vrcp.pop %v1055
    %v1096 = vrcp.pop %v1058
    %v1097 = vrcp.pop %v1061
    %v1098 = vrcp.pop %v1064
    %v1099 = vrcp.pop %v1067
    %v1100 = vrcp.pop %v1070
    %v1101 = vrcp.pop %v1073
    %v1102 = vrcp.pop %v1076
    %v1103 = vrcp.pop %v1079
    %v1104 = vrcp.pop %v1082
    %v1105 = vrcp.pop %v1085
    %v1106 = vrcp.pop %v1088
    %v1107 = vrcp.pop %v1091
    %v1108 = vmul.f32 %v1013, %v1092
    %v1109 = vmul.f32 %v1015, %v1093
    %v1110 = vmul.f32 %v1017, %v1094
    %v1111 = vmul.f32 %v1019, %v1095
    %v1112 = vmul.f32 %v1021, %v1096
    %v1113 = vmul.f32 %v1023, %v1097
    %v1114 = vmul.f32 %v1025, %v1098
    %v1115 = vmul.f32 %v1027, %v1099
    %v1116 = vmul.f32 %v1029, %v1100
    %v1117 = vmul.f32 %v1031, %v1101
    %v1118 = vmul.f32 %v1033, %v1102
    %v1119 = vmul.f32 %v1035, %v1103
    %v1120 = vmul.f32 %v1037, %v1104
    %v1121 = vmul.f32 %v1039, %v1105
    %v1122 = vmul.f32 %v1041, %v1106
    %v1123 = vmul.f32 %v1043, %v1107
    %1124 = vrot.lane.b32.xlu0 %v204, 64
    %v1125 = vpop.permute.xlu0 %1124
    %1126 = vrot.lane.b32.xlu0 %v209, 64
    %v1127 = vpop.permute.xlu0 %1126
    %v1131 = vsel %vm947, %v1108, 0
    %v1134 = vsel %vm947, %v1109, 0
    %1136 = vmatprep.subr.mxu0 0.0
    %1137 = vmatpush1.msra.mxu0 %v1125
    %1138 = vmatprep.subr.mxu0 0.0
    %1139 = vmatpush1.msra.mxu0 %v1127
    %1140 = vmatprep.subr.mxu0 0.0
    %1141 = vmatpush1.msra.mxu0 0.0
    %1142 = vmatprep.subr.mxu0 0.0
    %1143 = vmatpush1.msra.mxu0 0.0
    %1144 = vmatprep.subr.mxu0 0.0
    %1145 = vmatpush1.msra.mxu0 0.0
    %1146 = vmatprep.subr.mxu0 0.0
    %1147 = vmatpush1.msra.mxu0 0.0
    %1148 = vmatprep.subr.mxu0 0.0
    %1149 = vmatpush1.msra.mxu0 0.0
    %1150 = vmatprep.subr.mxu0 0.0
    %1151 = vmatpush1.msra.mxu0 0.0
    %1152 = vmatprep.subr.mxu0 0.0
    %1153 = vmatpush1.msra.mxu0 0.0
    %1154 = vmatprep.subr.mxu0 0.0
    %1155 = vmatpush1.msra.mxu0 0.0
    %1156 = vmatprep.subr.mxu0 0.0
    %1157 = vmatpush1.msra.mxu0 0.0
    %1158 = vmatprep.subr.mxu0 0.0
    %1159 = vmatpush1.msra.mxu0 0.0
    %1160 = vmatprep.subr.mxu0 0.0
    %1161 = vmatpush1.msra.mxu0 0.0
    %1162 = vmatprep.subr.mxu0 0.0
    %1163 = vmatpush1.msra.mxu0 0.0
    %1164 = vmatprep.subr.mxu0 0.0
    %1165 = vmatpush1.msra.mxu0 0.0
    %1166 = vmatprep.subr.mxu0 0.0
    %1167 = vmatpush1.msra.mxu0 0.0
    %1168 = vmatprep.subr.mxu0 0.0
    %1169 = vmatpush1.msra.mxu0 0.0
    %1170 = vmatprep.subr.mxu0 0.0
    %1171 = vmatpush1.msra.mxu0 0.0
    %1172 = vmatprep.subr.mxu0 0.0
    %1173 = vmatpush1.msra.mxu0 0.0
    %1174 = vmatprep.subr.mxu0 0.0
    %1175 = vmatpush1.msra.mxu0 0.0
    %1176 = vmatprep.subr.mxu0 0.0
    %1177 = vmatpush1.msra.mxu0 0.0
    %1178 = vmatprep.subr.mxu0 0.0
    %1179 = vmatpush1.msra.mxu0 0.0
    %1180 = vmatprep.subr.mxu0 0.0
    %1181 = vmatpush1.msra.mxu0 0.0
    %1182 = vmatprep.subr.mxu0 0.0
    %1183 = vmatpush1.msra.mxu0 0.0
    %1184 = vmatprep.subr.mxu0 0.0
    %1185 = vmatpush1.msra.mxu0 0.0
    %1186 = vmatprep.subr.mxu0 0.0
    %1187 = vmatpush1.msra.mxu0 0.0
    %1188 = vmatprep.subr.mxu0 0.0
    %1189 = vmatpush1.msra.mxu0 0.0
    %1190 = vmatprep.subr.mxu0 0.0
    %1191 = vmatpush1.msra.mxu0 0.0
    %1192 = vmatprep.subr.mxu0 0.0
    %1193 = vmatpush1.msra.mxu0 0.0
    %1194 = vmatprep.subr.mxu0 0.0
    %1195 = vmatpush1.msra.mxu0 0.0
    %1196 = vmatprep.subr.mxu0 0.0
    %1197 = vmatpush1.msra.mxu0 0.0
    %1198 = vmatprep.subr.mxu0 0.0
    %1199 = vmatpush1.msra.mxu0 0.0
    %1200 = vmatprep.mubr.f32.mxu0 0.0
    %1201 = vmatmul.mubr.f32.gmra.mrb[0].mxu0 %v1131
    %v1202 = vpop.f32.mrb[0].mxu0
    %v1203 = vadd.f32 0.0, %v1202
    %v1204 = vpop.f32.mrb[0].mxu0
    %1205 = vmatprep.mubr.f32.mxu0 0.0
    %1206 = vmatmul.mubr.f32.gmra.mrb[0].mxu0 %v1134
    %v1207 = vpop.f32.mrb[0].mxu0
    %v1208 = vadd.f32 0.0, %v1207
    %v1209 = vpop.f32.mrb[0].mxu0
    %1210 = vdwg.mxu0
    %1211 = vrot.lane.b32.xlu0 %v214, 64
    %v1212 = vpop.permute.xlu0 %1211
    %1213 = vrot.lane.b32.xlu0 %v219, 64
    %v1214 = vpop.permute.xlu0 %1213
    %v1218 = vsel %vm947, %v1110, 0
    %v1221 = vsel %vm947, %v1111, 0
    %1223 = vmatprep.subr.mxu0 0.0
    %1224 = vmatpush1.msra.mxu0 %v1212
    %1225 = vmatprep.subr.mxu0 0.0
    %1226 = vmatpush1.msra.mxu0 %v1214
    %1227 = vmatprep.subr.mxu0 0.0
    %1228 = vmatpush1.msra.mxu0 0.0
    %1229 = vmatprep.subr.mxu0 0.0
    %1230 = vmatpush1.msra.mxu0 0.0
    %1231 = vmatprep.subr.mxu0 0.0
    %1232 = vmatpush1.msra.mxu0 0.0
    %1233 = vmatprep.subr.mxu0 0.0
    %1234 = vmatpush1.msra.mxu0 0.0
    %1235 = vmatprep.subr.mxu0 0.0
    %1236 = vmatpush1.msra.mxu0 0.0
    %1237 = vmatprep.subr.mxu0 0.0
    %1238 = vmatpush1.msra.mxu0 0.0
    %1239 = vmatprep.subr.mxu0 0.0
    %1240 = vmatpush1.msra.mxu0 0.0
    %1241 = vmatprep.subr.mxu0 0.0
    %1242 = vmatpush1.msra.mxu0 0.0
    %1243 = vmatprep.subr.mxu0 0.0
    %1244 = vmatpush1.msra.mxu0 0.0
    %1245 = vmatprep.subr.mxu0 0.0
    %1246 = vmatpush1.msra.mxu0 0.0
    %1247 = vmatprep.subr.mxu0 0.0
    %1248 = vmatpush1.msra.mxu0 0.0
    %1249 = vmatprep.subr.mxu0 0.0
    %1250 = vmatpush1.msra.mxu0 0.0
    %1251 = vmatprep.subr.mxu0 0.0
    %1252 = vmatpush1.msra.mxu0 0.0
    %1253 = vmatprep.subr.mxu0 0.0
    %1254 = vmatpush1.msra.mxu0 0.0
    %1255 = vmatprep.subr.mxu0 0.0
    %1256 = vmatpush1.msra.mxu0 0.0
    %1257 = vmatprep.subr.mxu0 0.0
    %1258 = vmatpush1.msra.mxu0 0.0
    %1259 = vmatprep.subr.mxu0 0.0
    %1260 = vmatpush1.msra.mxu0 0.0
    %1261 = vmatprep.subr.mxu0 0.0
    %1262 = vmatpush1.msra.mxu0 0.0
    %1263 = vmatprep.subr.mxu0 0.0
    %1264 = vmatpush1.msra.mxu0 0.0
    %1265 = vmatprep.subr.mxu0 0.0
    %1266 = vmatpush1.msra.mxu0 0.0
    %1267 = vmatprep.subr.mxu0 0.0
    %1268 = vmatpush1.msra.mxu0 0.0
    %1269 = vmatprep.subr.mxu0 0.0
    %1270 = vmatpush1.msra.mxu0 0.0
    %1271 = vmatprep.subr.mxu0 0.0
    %1272 = vmatpush1.msra.mxu0 0.0
    %1273 = vmatprep.subr.mxu0 0.0
    %1274 = vmatpush1.msra.mxu0 0.0
    %1275 = vmatprep.subr.mxu0 0.0
    %1276 = vmatpush1.msra.mxu0 0.0
    %1277 = vmatprep.subr.mxu0 0.0
    %1278 = vmatpush1.msra.mxu0 0.0
    %1279 = vmatprep.subr.mxu0 0.0
    %1280 = vmatpush1.msra.mxu0 0.0
    %1281 = vmatprep.subr.mxu0 0.0
    %1282 = vmatpush1.msra.mxu0 0.0
    %1283 = vmatprep.subr.mxu0 0.0
    %1284 = vmatpush1.msra.mxu0 0.0
    %1285 = vmatprep.subr.mxu0 0.0
    %1286 = vmatpush1.msra.mxu0 0.0
    %1287 = vmatprep.mubr.f32.mxu0 0.0
    %1288 = vmatmul.mubr.f32.gmra.mrb[0].mxu0 %v1218
    %v1289 = vpop.f32.mrb[0].mxu0
    %v1290 = vadd.f32 0.0, %v1289
    %v1291 = vpop.f32.mrb[0].mxu0
    %1292 = vmatprep.mubr.f32.mxu0 0.0
    %1293 = vmatmul.mubr.f32.gmra.mrb[0].mxu0 %v1221
    %v1294 = vpop.f32.mrb[0].mxu0
    %v1295 = vadd.f32 0.0, %v1294
    %v1296 = vpop.f32.mrb[0].mxu0
    %1297 = vdwg.mxu0
    %1298 = vrot.lane.b32.xlu0 %v227, 64
    %v1299 = vpop.permute.xlu0 %1298
    %1300 = vrot.lane.b32.xlu0 %v229, 64
    %v1301 = vpop.permute.xlu0 %1300
    %v1305 = vsel %vm947, %v1112, 0
    %v1308 = vsel %vm947, %v1113, 0
    %1310 = vmatprep.subr.mxu0 0.0
    %1311 = vmatpush1.msra.mxu0 %v1299
    %1312 = vmatprep.subr.mxu0 0.0
    %1313 = vmatpush1.msra.mxu0 %v1301
    %1314 = vmatprep.subr.mxu0 0.0
    %1315 = vmatpush1.msra.mxu0 0.0
    %1316 = vmatprep.subr.mxu0 0.0
    %1317 = vmatpush1.msra.mxu0 0.0
    %1318 = vmatprep.subr.mxu0 0.0
    %1319 = vmatpush1.msra.mxu0 0.0
    %1320 = vmatprep.subr.mxu0 0.0
    %1321 = vmatpush1.msra.mxu0 0.0
    %1322 = vmatprep.subr.mxu0 0.0
    %1323 = vmatpush1.msra.mxu0 0.0
    %1324 = vmatprep.subr.mxu0 0.0
    %1325 = vmatpush1.msra.mxu0 0.0
    %1326 = vmatprep.subr.mxu0 0.0
    %1327 = vmatpush1.msra.mxu0 0.0
    %1328 = vmatprep.subr.mxu0 0.0
    %1329 = vmatpush1.msra.mxu0 0.0
    %1330 = vmatprep.subr.mxu0 0.0
    %1331 = vmatpush1.msra.mxu0 0.0
    %1332 = vmatprep.subr.mxu0 0.0
    %1333 = vmatpush1.msra.mxu0 0.0
    %1334 = vmatprep.subr.mxu0 0.0
    %1335 = vmatpush1.msra.mxu0 0.0
    %1336 = vmatprep.subr.mxu0 0.0
    %1337 = vmatpush1.msra.mxu0 0.0
    %1338 = vmatprep.subr.mxu0 0.0
    %1339 = vmatpush1.msra.mxu0 0.0
    %1340 = vmatprep.subr.mxu0 0.0
    %1341 = vmatpush1.msra.mxu0 0.0
    %1342 = vmatprep.subr.mxu0 0.0
    %1343 = vmatpush1.msra.mxu0 0.0
    %1344 = vmatprep.subr.mxu0 0.0
    %1345 = vmatpush1.msra.mxu0 0.0
    %1346 = vmatprep.subr.mxu0 0.0
    %1347 = vmatpush1.msra.mxu0 0.0
    %1348 = vmatprep.subr.mxu0 0.0
    %1349 = vmatpush1.msra.mxu0 0.0
    %1350 = vmatprep.subr.mxu0 0.0
    %1351 = vmatpush1.msra.mxu0 0.0
    %1352 = vmatprep.subr.mxu0 0.0
    %1353 = vmatpush1.msra.mxu0 0.0
    %1354 = vmatprep.subr.mxu0 0.0
    %1355 = vmatpush1.msra.mxu0 0.0
    %1356 = vmatprep.subr.mxu0 0.0
    %1357 = vmatpush1.msra.mxu0 0.0
    %1358 = vmatprep.subr.mxu0 0.0
    %1359 = vmatpush1.msra.mxu0 0.0
    %1360 = vmatprep.subr.mxu0 0.0
    %1361 = vmatpush1.msra.mxu0 0.0
    %1362 = vmatprep.subr.mxu0 0.0
    %1363 = vmatpush1.msra.mxu0 0.0
    %1364 = vmatprep.subr.mxu0 0.0
    %1365 = vmatpush1.msra.mxu0 0.0
    %1366 = vmatprep.subr.mxu0 0.0
    %1367 = vmatpush1.msra.mxu0 0.0
    %1368 = vmatprep.subr.mxu0 0.0
    %1369 = vmatpush1.msra.mxu0 0.0
    %1370 = vmatprep.subr.mxu0 0.0
    %1371 = vmatpush1.msra.mxu0 0.0
    %1372 = vmatprep.subr.mxu0 0.0
    %1373 = vmatpush1.msra.mxu0 0.0
    %1374 = vmatprep.mubr.f32.mxu0 0.0
    %1375 = vmatmul.mubr.f32.gmra.mrb[0].mxu0 %v1305
    %v1376 = vpop.f32.mrb[0].mxu0
    %v1377 = vadd.f32 0.0, %v1376
    %v1378 = vpop.f32.mrb[0].mxu0
    %1379 = vmatprep.mubr.f32.mxu0 0.0
    %1380 = vmatmul.mubr.f32.gmra.mrb[0].mxu0 %v1308
    %v1381 = vpop.f32.mrb[0].mxu0
    %v1382 = vadd.f32 0.0, %v1381
    %v1383 = vpop.f32.mrb[0].mxu0
    %1384 = vdwg.mxu0
    %1385 = vrot.lane.b32.xlu0 %v231, 64
    %v1386 = vpop.permute.xlu0 %1385
    %1387 = vrot.lane.b32.xlu0 %v233, 64
    %v1388 = vpop.permute.xlu0 %1387
    %v1392 = vsel %vm947, %v1114, 0
    %v1395 = vsel %vm947, %v1115, 0
    %1397 = vmatprep.subr.mxu0 0.0
    %1398 = vmatpush1.msra.mxu0 %v1386
    %1399 = vmatprep.subr.mxu0 0.0
    %1400 = vmatpush1.msra.mxu0 %v1388
    %1401 = vmatprep.subr.mxu0 0.0
    %1402 = vmatpush1.msra.mxu0 0.0
    %1403 = vmatprep.subr.mxu0 0.0
    %1404 = vmatpush1.msra.mxu0 0.0
    %1405 = vmatprep.subr.mxu0 0.0
    %1406 = vmatpush1.msra.mxu0 0.0
    %1407 = vmatprep.subr.mxu0 0.0
    %1408 = vmatpush1.msra.mxu0 0.0
    %1409 = vmatprep.subr.mxu0 0.0
    %1410 = vmatpush1.msra.mxu0 0.0
    %1411 = vmatprep.subr.mxu0 0.0
    %1412 = vmatpush1.msra.mxu0 0.0
    %1413 = vmatprep.subr.mxu0 0.0
    %1414 = vmatpush1.msra.mxu0 0.0
    %1415 = vmatprep.subr.mxu0 0.0
    %1416 = vmatpush1.msra.mxu0 0.0
    %1417 = vmatprep.subr.mxu0 0.0
    %1418 = vmatpush1.msra.mxu0 0.0
    %1419 = vmatprep.subr.mxu0 0.0
    %1420 = vmatpush1.msra.mxu0 0.0
    %1421 = vmatprep.subr.mxu0 0.0
    %1422 = vmatpush1.msra.mxu0 0.0
    %1423 = vmatprep.subr.mxu0 0.0
    %1424 = vmatpush1.msra.mxu0 0.0
    %1425 = vmatprep.subr.mxu0 0.0
    %1426 = vmatpush1.msra.mxu0 0.0
    %1427 = vmatprep.subr.mxu0 0.0
    %1428 = vmatpush1.msra.mxu0 0.0
    %1429 = vmatprep.subr.mxu0 0.0
    %1430 = vmatpush1.msra.mxu0 0.0
    %1431 = vmatprep.subr.mxu0 0.0
    %1432 = vmatpush1.msra.mxu0 0.0
    %1433 = vmatprep.subr.mxu0 0.0
    %1434 = vmatpush1.msra.mxu0 0.0
    %1435 = vmatprep.subr.mxu0 0.0
    %1436 = vmatpush1.msra.mxu0 0.0
    %1437 = vmatprep.subr.mxu0 0.0
    %1438 = vmatpush1.msra.mxu0 0.0
    %1439 = vmatprep.subr.mxu0 0.0
    %1440 = vmatpush1.msra.mxu0 0.0
    %1441 = vmatprep.subr.mxu0 0.0
    %1442 = vmatpush1.msra.mxu0 0.0
    %1443 = vmatprep.subr.mxu0 0.0
    %1444 = vmatpush1.msra.mxu0 0.0
    %1445 = vmatprep.subr.mxu0 0.0
    %1446 = vmatpush1.msra.mxu0 0.0
    %1447 = vmatprep.subr.mxu0 0.0
    %1448 = vmatpush1.msra.mxu0 0.0
    %1449 = vmatprep.subr.mxu0 0.0
    %1450 = vmatpush1.msra.mxu0 0.0
    %1451 = vmatprep.subr.mxu0 0.0
    %1452 = vmatpush1.msra.mxu0 0.0
    %1453 = vmatprep.subr.mxu0 0.0
    %1454 = vmatpush1.msra.mxu0 0.0
    %1455 = vmatprep.subr.mxu0 0.0
    %1456 = vmatpush1.msra.mxu0 0.0
    %1457 = vmatprep.subr.mxu0 0.0
    %1458 = vmatpush1.msra.mxu0 0.0
    %1459 = vmatprep.subr.mxu0 0.0
    %1460 = vmatpush1.msra.mxu0 0.0
    %1461 = vmatprep.mubr.f32.mxu0 0.0
    %1462 = vmatmul.mubr.f32.gmra.mrb[0].mxu0 %v1392
    %v1463 = vpop.f32.mrb[0].mxu0
    %v1464 = vadd.f32 0.0, %v1463
    %v1465 = vpop.f32.mrb[0].mxu0
    %1466 = vmatprep.mubr.f32.mxu0 0.0
    %1467 = vmatmul.mubr.f32.gmra.mrb[0].mxu0 %v1395
    %v1468 = vpop.f32.mrb[0].mxu0
    %v1469 = vadd.f32 0.0, %v1468
    %v1470 = vpop.f32.mrb[0].mxu0
    %1471 = vdwg.mxu0
    %1472 = vrot.lane.b32.xlu0 %v235, 64
    %v1473 = vpop.permute.xlu0 %1472
    %1474 = vrot.lane.b32.xlu0 %v237, 64
    %v1475 = vpop.permute.xlu0 %1474
    %v1479 = vsel %vm947, %v1116, 0
    %v1482 = vsel %vm947, %v1117, 0
    %1484 = vmatprep.subr.mxu0 0.0
    %1485 = vmatpush1.msra.mxu0 %v1473
    %1486 = vmatprep.subr.mxu0 0.0
    %1487 = vmatpush1.msra.mxu0 %v1475
    %1488 = vmatprep.subr.mxu0 0.0
    %1489 = vmatpush1.msra.mxu0 0.0
    %1490 = vmatprep.subr.mxu0 0.0
    %1491 = vmatpush1.msra.mxu0 0.0
    %1492 = vmatprep.subr.mxu0 0.0
    %1493 = vmatpush1.msra.mxu0 0.0
    %1494 = vmatprep.subr.mxu0 0.0
    %1495 = vmatpush1.msra.mxu0 0.0
    %1496 = vmatprep.subr.mxu0 0.0
    %1497 = vmatpush1.msra.mxu0 0.0
    %1498 = vmatprep.subr.mxu0 0.0
    %1499 = vmatpush1.msra.mxu0 0.0
    %1500 = vmatprep.subr.mxu0 0.0
    %1501 = vmatpush1.msra.mxu0 0.0
    %1502 = vmatprep.subr.mxu0 0.0
    %1503 = vmatpush1.msra.mxu0 0.0
    %1504 = vmatprep.subr.mxu0 0.0
    %1505 = vmatpush1.msra.mxu0 0.0
    %1506 = vmatprep.subr.mxu0 0.0
    %1507 = vmatpush1.msra.mxu0 0.0
    %1508 = vmatprep.subr.mxu0 0.0
    %1509 = vmatpush1.msra.mxu0 0.0
    %1510 = vmatprep.subr.mxu0 0.0
    %1511 = vmatpush1.msra.mxu0 0.0
    %1512 = vmatprep.subr.mxu0 0.0
    %1513 = vmatpush1.msra.mxu0 0.0
    %1514 = vmatprep.subr.mxu0 0.0
    %1515 = vmatpush1.msra.mxu0 0.0
    %1516 = vmatprep.subr.mxu0 0.0
    %1517 = vmatpush1.msra.mxu0 0.0
    %1518 = vmatprep.subr.mxu0 0.0
    %1519 = vmatpush1.msra.mxu0 0.0
    %1520 = vmatprep.subr.mxu0 0.0
    %1521 = vmatpush1.msra.mxu0 0.0
    %1522 = vmatprep.subr.mxu0 0.0
    %1523 = vmatpush1.msra.mxu0 0.0
    %1524 = vmatprep.subr.mxu0 0.0
    %1525 = vmatpush1.msra.mxu0 0.0
    %1526 = vmatprep.subr.mxu0 0.0
    %1527 = vmatpush1.msra.mxu0 0.0
    %1528 = vmatprep.subr.mxu0 0.0
    %1529 = vmatpush1.msra.mxu0 0.0
    %1530 = vmatprep.subr.mxu0 0.0
    %1531 = vmatpush1.msra.mxu0 0.0
    %1532 = vmatprep.subr.mxu0 0.0
    %1533 = vmatpush1.msra.mxu0 0.0
    %1534 = vmatprep.subr.mxu0 0.0
    %1535 = vmatpush1.msra.mxu0 0.0
    %1536 = vmatprep.subr.mxu0 0.0
    %1537 = vmatpush1.msra.mxu0 0.0
    %1538 = vmatprep.subr.mxu0 0.0
    %1539 = vmatpush1.msra.mxu0 0.0
    %1540 = vmatprep.subr.mxu0 0.0
    %1541 = vmatpush1.msra.mxu0 0.0
    %1542 = vmatprep.subr.mxu0 0.0
    %1543 = vmatpush1.msra.mxu0 0.0
    %1544 = vmatprep.subr.mxu0 0.0
    %1545 = vmatpush1.msra.mxu0 0.0
    %1546 = vmatprep.subr.mxu0 0.0
    %1547 = vmatpush1.msra.mxu0 0.0
    %1548 = vmatprep.mubr.f32.mxu0 0.0
    %1549 = vmatmul.mubr.f32.gmra.mrb[0].mxu0 %v1479
    %v1550 = vpop.f32.mrb[0].mxu0
    %v1551 = vadd.f32 0.0, %v1550
    %v1552 = vpop.f32.mrb[0].mxu0
    %1553 = vmatprep.mubr.f32.mxu0 0.0
    %1554 = vmatmul.mubr.f32.gmra.mrb[0].mxu0 %v1482
    %v1555 = vpop.f32.mrb[0].mxu0
    %v1556 = vadd.f32 0.0, %v1555
    %v1557 = vpop.f32.mrb[0].mxu0
    %1558 = vdwg.mxu0
    %1559 = vrot.lane.b32.xlu0 %v239, 64
    %v1560 = vpop.permute.xlu0 %1559
    %1561 = vrot.lane.b32.xlu0 %v241, 64
    %v1562 = vpop.permute.xlu0 %1561
    %v1566 = vsel %vm947, %v1118, 0
    %v1569 = vsel %vm947, %v1119, 0
    %1571 = vmatprep.subr.mxu0 0.0
    %1572 = vmatpush1.msra.mxu0 %v1560
    %1573 = vmatprep.subr.mxu0 0.0
    %1574 = vmatpush1.msra.mxu0 %v1562
    %1575 = vmatprep.subr.mxu0 0.0
    %1576 = vmatpush1.msra.mxu0 0.0
    %1577 = vmatprep.subr.mxu0 0.0
    %1578 = vmatpush1.msra.mxu0 0.0
    %1579 = vmatprep.subr.mxu0 0.0
    %1580 = vmatpush1.msra.mxu0 0.0
    %1581 = vmatprep.subr.mxu0 0.0
    %1582 = vmatpush1.msra.mxu0 0.0
    %1583 = vmatprep.subr.mxu0 0.0
    %1584 = vmatpush1.msra.mxu0 0.0
    %1585 = vmatprep.subr.mxu0 0.0
    %1586 = vmatpush1.msra.mxu0 0.0
    %1587 = vmatprep.subr.mxu0 0.0
    %1588 = vmatpush1.msra.mxu0 0.0
    %1589 = vmatprep.subr.mxu0 0.0
    %1590 = vmatpush1.msra.mxu0 0.0
    %1591 = vmatprep.subr.mxu0 0.0
    %1592 = vmatpush1.msra.mxu0 0.0
    %1593 = vmatprep.subr.mxu0 0.0
    %1594 = vmatpush1.msra.mxu0 0.0
    %1595 = vmatprep.subr.mxu0 0.0
    %1596 = vmatpush1.msra.mxu0 0.0
    %1597 = vmatprep.subr.mxu0 0.0
    %1598 = vmatpush1.msra.mxu0 0.0
    %1599 = vmatprep.subr.mxu0 0.0
    %1600 = vmatpush1.msra.mxu0 0.0
    %1601 = vmatprep.subr.mxu0 0.0
    %1602 = vmatpush1.msra.mxu0 0.0
    %1603 = vmatprep.subr.mxu0 0.0
    %1604 = vmatpush1.msra.mxu0 0.0
    %1605 = vmatprep.subr.mxu0 0.0
    %1606 = vmatpush1.msra.mxu0 0.0
    %1607 = vmatprep.subr.mxu0 0.0
    %1608 = vmatpush1.msra.mxu0 0.0
    %1609 = vmatprep.subr.mxu0 0.0
    %1610 = vmatpush1.msra.mxu0 0.0
    %1611 = vmatprep.subr.mxu0 0.0
    %1612 = vmatpush1.msra.mxu0 0.0
    %1613 = vmatprep.subr.mxu0 0.0
    %1614 = vmatpush1.msra.mxu0 0.0
    %1615 = vmatprep.subr.mxu0 0.0
    %1616 = vmatpush1.msra.mxu0 0.0
    %1617 = vmatprep.subr.mxu0 0.0
    %1618 = vmatpush1.msra.mxu0 0.0
    %1619 = vmatprep.subr.mxu0 0.0
    %1620 = vmatpush1.msra.mxu0 0.0
    %1621 = vmatprep.subr.mxu0 0.0
    %1622 = vmatpush1.msra.mxu0 0.0
    %1623 = vmatprep.subr.mxu0 0.0
    %1624 = vmatpush1.msra.mxu0 0.0
    %1625 = vmatprep.subr.mxu0 0.0
    %1626 = vmatpush1.msra.mxu0 0.0
    %1627 = vmatprep.subr.mxu0 0.0
    %1628 = vmatpush1.msra.mxu0 0.0
    %1629 = vmatprep.subr.mxu0 0.0
    %1630 = vmatpush1.msra.mxu0 0.0
    %1631 = vmatprep.subr.mxu0 0.0
    %1632 = vmatpush1.msra.mxu0 0.0
    %1633 = vmatprep.subr.mxu0 0.0
    %1634 = vmatpush1.msra.mxu0 0.0
    %1635 = vmatprep.mubr.f32.mxu0 0.0
    %1636 = vmatmul.mubr.f32.gmra.mrb[0].mxu0 %v1566
    %v1637 = vpop.f32.mrb[0].mxu0
    %v1638 = vadd.f32 0.0, %v1637
    %v1639 = vpop.f32.mrb[0].mxu0
    %1640 = vmatprep.mubr.f32.mxu0 0.0
    %1641 = vmatmul.mubr.f32.gmra.mrb[0].mxu0 %v1569
    %v1642 = vpop.f32.mrb[0].mxu0
    %v1643 = vadd.f32 0.0, %v1642
    %v1644 = vpop.f32.mrb[0].mxu0
    %1645 = vdwg.mxu0
    %1646 = vrot.lane.b32.xlu0 %v243, 64
    %v1647 = vpop.permute.xlu0 %1646
    %1648 = vrot.lane.b32.xlu0 %v245, 64
    %v1649 = vpop.permute.xlu0 %1648
    %v1653 = vsel %vm947, %v1120, 0
    %v1656 = vsel %vm947, %v1121, 0
    %1658 = vmatprep.subr.mxu0 0.0
    %1659 = vmatpush1.msra.mxu0 %v1647
    %1660 = vmatprep.subr.mxu0 0.0
    %1661 = vmatpush1.msra.mxu0 %v1649
    %1662 = vmatprep.subr.mxu0 0.0
    %1663 = vmatpush1.msra.mxu0 0.0
    %1664 = vmatprep.subr.mxu0 0.0
    %1665 = vmatpush1.msra.mxu0 0.0
    %1666 = vmatprep.subr.mxu0 0.0
    %1667 = vmatpush1.msra.mxu0 0.0
    %1668 = vmatprep.subr.mxu0 0.0
    %1669 = vmatpush1.msra.mxu0 0.0
    %1670 = vmatprep.subr.mxu0 0.0
    %1671 = vmatpush1.msra.mxu0 0.0
    %1672 = vmatprep.subr.mxu0 0.0
    %1673 = vmatpush1.msra.mxu0 0.0
    %1674 = vmatprep.subr.mxu0 0.0
    %1675 = vmatpush1.msra.mxu0 0.0
    %1676 = vmatprep.subr.mxu0 0.0
    %1677 = vmatpush1.msra.mxu0 0.0
    %1678 = vmatprep.subr.mxu0 0.0
    %1679 = vmatpush1.msra.mxu0 0.0
    %1680 = vmatprep.subr.mxu0 0.0
    %1681 = vmatpush1.msra.mxu0 0.0
    %1682 = vmatprep.subr.mxu0 0.0
    %1683 = vmatpush1.msra.mxu0 0.0
    %1684 = vmatprep.subr.mxu0 0.0
    %1685 = vmatpush1.msra.mxu0 0.0
    %1686 = vmatprep.subr.mxu0 0.0
    %1687 = vmatpush1.msra.mxu0 0.0
    %1688 = vmatprep.subr.mxu0 0.0
    %1689 = vmatpush1.msra.mxu0 0.0
    %1690 = vmatprep.subr.mxu0 0.0
    %1691 = vmatpush1.msra.mxu0 0.0
    %1692 = vmatprep.subr.mxu0 0.0
    %1693 = vmatpush1.msra.mxu0 0.0
    %1694 = vmatprep.subr.mxu0 0.0
    %1695 = vmatpush1.msra.mxu0 0.0
    %1696 = vmatprep.subr.mxu0 0.0
    %1697 = vmatpush1.msra.mxu0 0.0
    %1698 = vmatprep.subr.mxu0 0.0
    %1699 = vmatpush1.msra.mxu0 0.0
    %1700 = vmatprep.subr.mxu0 0.0
    %1701 = vmatpush1.msra.mxu0 0.0
    %1702 = vmatprep.subr.mxu0 0.0
    %1703 = vmatpush1.msra.mxu0 0.0
    %1704 = vmatprep.subr.mxu0 0.0
    %1705 = vmatpush1.msra.mxu0 0.0
    %1706 = vmatprep.subr.mxu0 0.0
    %1707 = vmatpush1.msra.mxu0 0.0
    %1708 = vmatprep.subr.mxu0 0.0
    %1709 = vmatpush1.msra.mxu0 0.0
    %1710 = vmatprep.subr.mxu0 0.0
    %1711 = vmatpush1.msra.mxu0 0.0
    %1712 = vmatprep.subr.mxu0 0.0
    %1713 = vmatpush1.msra.mxu0 0.0
    %1714 = vmatprep.subr.mxu0 0.0
    %1715 = vmatpush1.msra.mxu0 0.0
    %1716 = vmatprep.subr.mxu0 0.0
    %1717 = vmatpush1.msra.mxu0 0.0
    %1718 = vmatprep.subr.mxu0 0.0
    %1719 = vmatpush1.msra.mxu0 0.0
    %1720 = vmatprep.subr.mxu0 0.0
    %1721 = vmatpush1.msra.mxu0 0.0
    %1722 = vmatprep.mubr.f32.mxu0 0.0
    %1723 = vmatmul.mubr.f32.gmra.mrb[0].mxu0 %v1653
    %v1724 = vpop.f32.mrb[0].mxu0
    %v1725 = vadd.f32 0.0, %v1724
    %v1726 = vpop.f32.mrb[0].mxu0
    %1727 = vmatprep.mubr.f32.mxu0 0.0
    %1728 = vmatmul.mubr.f32.gmra.mrb[0].mxu0 %v1656
    %v1729 = vpop.f32.mrb[0].mxu0
    %v1730 = vadd.f32 0.0, %v1729
    %v1731 = vpop.f32.mrb[0].mxu0
    %1732 = vdwg.mxu0
    %1733 = vrot.lane.b32.xlu0 %v247, 64
    %v1734 = vpop.permute.xlu0 %1733
    %1735 = vrot.lane.b32.xlu0 %v249, 64
    %v1736 = vpop.permute.xlu0 %1735
    %v1740 = vsel %vm947, %v1122, 0
    %v1743 = vsel %vm947, %v1123, 0
    %1745 = vmatprep.subr.mxu0 0.0
    %1746 = vmatpush1.msra.mxu0 %v1734
    %1747 = vmatprep.subr.mxu0 0.0
    %1748 = vmatpush1.msra.mxu0 %v1736
    %1749 = vmatprep.subr.mxu0 0.0
    %1750 = vmatpush1.msra.mxu0 0.0
    %1751 = vmatprep.subr.mxu0 0.0
    %1752 = vmatpush1.msra.mxu0 0.0
    %1753 = vmatprep.subr.mxu0 0.0
    %1754 = vmatpush1.msra.mxu0 0.0
    %1755 = vmatprep.subr.mxu0 0.0
    %1756 = vmatpush1.msra.mxu0 0.0
    %1757 = vmatprep.subr.mxu0 0.0
    %1758 = vmatpush1.msra.mxu0 0.0
    %1759 = vmatprep.subr.mxu0 0.0
    %1760 = vmatpush1.msra.mxu0 0.0
    %1761 = vmatprep.subr.mxu0 0.0
    %1762 = vmatpush1.msra.mxu0 0.0
    %1763 = vmatprep.subr.mxu0 0.0
    %1764 = vmatpush1.msra.mxu0 0.0
    %1765 = vmatprep.subr.mxu0 0.0
    %1766 = vmatpush1.msra.mxu0 0.0
    %1767 = vmatprep.subr.mxu0 0.0
    %1768 = vmatpush1.msra.mxu0 0.0
    %1769 = vmatprep.subr.mxu0 0.0
    %1770 = vmatpush1.msra.mxu0 0.0
    %1771 = vmatprep.subr.mxu0 0.0
    %1772 = vmatpush1.msra.mxu0 0.0
    %1773 = vmatprep.subr.mxu0 0.0
    %1774 = vmatpush1.msra.mxu0 0.0
    %1775 = vmatprep.subr.mxu0 0.0
    %1776 = vmatpush1.msra.mxu0 0.0
    %1777 = vmatprep.subr.mxu0 0.0
    %1778 = vmatpush1.msra.mxu0 0.0
    %1779 = vmatprep.subr.mxu0 0.0
    %1780 = vmatpush1.msra.mxu0 0.0
    %1781 = vmatprep.subr.mxu0 0.0
    %1782 = vmatpush1.msra.mxu0 0.0
    %1783 = vmatprep.subr.mxu0 0.0
    %1784 = vmatpush1.msra.mxu0 0.0
    %1785 = vmatprep.subr.mxu0 0.0
    %1786 = vmatpush1.msra.mxu0 0.0
    %1787 = vmatprep.subr.mxu0 0.0
    %1788 = vmatpush1.msra.mxu0 0.0
    %1789 = vmatprep.subr.mxu0 0.0
    %1790 = vmatpush1.msra.mxu0 0.0
    %1791 = vmatprep.subr.mxu0 0.0
    %1792 = vmatpush1.msra.mxu0 0.0
    %1793 = vmatprep.subr.mxu0 0.0
    %1794 = vmatpush1.msra.mxu0 0.0
    %1795 = vmatprep.subr.mxu0 0.0
    %1796 = vmatpush1.msra.mxu0 0.0
    %1797 = vmatprep.subr.mxu0 0.0
    %1798 = vmatpush1.msra.mxu0 0.0
    %1799 = vmatprep.subr.mxu0 0.0
    %1800 = vmatpush1.msra.mxu0 0.0
    %1801 = vmatprep.subr.mxu0 0.0
    %1802 = vmatpush1.msra.mxu0 0.0
    %1803 = vmatprep.subr.mxu0 0.0
    %1804 = vmatpush1.msra.mxu0 0.0
    %1805 = vmatprep.subr.mxu0 0.0
    %1806 = vmatpush1.msra.mxu0 0.0
    %1807 = vmatprep.subr.mxu0 0.0
    %1808 = vmatpush1.msra.mxu0 0.0
    %1809 = vmatprep.mubr.f32.mxu0 0.0
    %1810 = vmatmul.mubr.f32.gmra.mrb[0].mxu0 %v1740
    %v1811 = vpop.f32.mrb[0].mxu0
    %v1812 = vadd.f32 0.0, %v1811
    %v1813 = vpop.f32.mrb[0].mxu0
    %1814 = vmatprep.mubr.f32.mxu0 0.0
    %1815 = vmatmul.mubr.f32.gmra.mrb[0].mxu0 %v1743
    %v1816 = vpop.f32.mrb[0].mxu0
    %v1817 = vadd.f32 0.0, %v1816
    %v1818 = vpop.f32.mrb[0].mxu0
    %1819 = vdwg.mxu0
    %1824 = vrot.lane.b32.xlu0 %v1377, 8
    %v1825 = vpop.permute.xlu0 %1824
    %1826 = vrot.lane.b32.xlu0 %v1382, 8
    %v1827 = vpop.permute.xlu0 %1826
    %1828 = vrot.lane.b32.xlu0 %v1464, 8
    %v1829 = vpop.permute.xlu0 %1828
    %1830 = vrot.lane.b32.xlu0 %v1469, 8
    %v1831 = vpop.permute.xlu0 %1830
    %1840 = vrot.lane.b32.xlu0 %v1551, 16
    %v1841 = vpop.permute.xlu0 %1840
    %1842 = vrot.lane.b32.xlu0 %v1556, 16
    %v1843 = vpop.permute.xlu0 %1842
    %1844 = vrot.lane.b32.xlu0 %v1638, 16
    %v1845 = vpop.permute.xlu0 %1844
    %1846 = vrot.lane.b32.xlu0 %v1643, 16
    %v1847 = vpop.permute.xlu0 %1846
    %1856 = vrot.lane.b32.xlu0 %v1725, 24
    %v1857 = vpop.permute.xlu0 %1856
    %1858 = vrot.lane.b32.xlu0 %v1730, 24
    %v1859 = vpop.permute.xlu0 %1858
    %1860 = vrot.lane.b32.xlu0 %v1812, 24
    %v1861 = vpop.permute.xlu0 %1860
    %1862 = vrot.lane.b32.xlu0 %v1817, 24
    %v1863 = vpop.permute.xlu0 %1862
    %v1868 = vsel %vm254, %v1203, %v1825
    %v1869 = vsel %vm254, %v1208, %v1827
    %v1870 = vsel %vm254, %v1290, %v1829
    %v1871 = vsel %vm254, %v1295, %v1831
    %v1872 = vsel %vm947, %v1868, %v1841
    %v1873 = vsel %vm947, %v1869, %v1843
    %v1874 = vsel %vm947, %v1870, %v1845
    %v1875 = vsel %vm947, %v1871, %v1847
    %vm1876 = vcmask 195584
    %v1877 = vsel %vm1876, %v1872, %v1857
    %v1878 = vsel %vm1876, %v1873, %v1859
    %v1879 = vsel %vm1876, %v1874, %v1861
    %v1880 = vsel %vm1876, %v1875, %v1863
    %v1881 = vld [vmem:[#allocation5 + $0x40] sm:$0xff]
    %v1882 = vld [vmem:[#allocation5 + $0x48] sm:$0xff]
    %v1883 = vld [vmem:[#allocation5 + $0x50] sm:$0xff]
    %v1884 = vld [vmem:[#allocation5 + $0x58] sm:$0xff]
    %v1885 = vlaneseq
    %v1886 = vshrl.u32 %v1885, 7
    %v1887 = vsub.s32 0, %v1886
    %v1888 = vrot.slane %v48, %v1887
    %v1890 = vsel %vm51, %v1877, 0
    %v1893 = vsel %vm51, %v1878, 0
    %v1896 = vsel %vm51, %v1879, 0
    %v1899 = vsel %vm51, %v1880, 0
    %1901 = vmatprep.subr.mxu0 0.0
    %1902 = vmatpush1.msra.mxu0 %v1881
    %1903 = vmatprep.subr.mxu0 0.0
    %1904 = vmatpush1.msra.mxu0 %v1882
    %1905 = vmatprep.subr.mxu0 0.0
    %1906 = vmatpush1.msra.mxu0 %v1883
    %1907 = vmatprep.subr.mxu0 0.0
    %1908 = vmatpush1.msra.mxu0 %v1884
    %1909 = vmatprep.subr.mxu0 0.0
    %1910 = vmatpush1.msra.mxu0 0.0
    %1911 = vmatprep.subr.mxu0 0.0
    %1912 = vmatpush1.msra.mxu0 0.0
    %1913 = vmatprep.subr.mxu0 0.0
    %1914 = vmatpush1.msra.mxu0 0.0
    %1915 = vmatprep.subr.mxu0 0.0
    %1916 = vmatpush1.msra.mxu0 0.0
    %1917 = vmatprep.subr.mxu0 0.0
    %1918 = vmatpush1.msra.mxu0 0.0
    %1919 = vmatprep.subr.mxu0 0.0
    %1920 = vmatpush1.msra.mxu0 0.0
    %1921 = vmatprep.subr.mxu0 0.0
    %1922 = vmatpush1.msra.mxu0 0.0
    %1923 = vmatprep.subr.mxu0 0.0
    %1924 = vmatpush1.msra.mxu0 0.0
    %1925 = vmatprep.subr.mxu0 0.0
    %1926 = vmatpush1.msra.mxu0 0.0
    %1927 = vmatprep.subr.mxu0 0.0
    %1928 = vmatpush1.msra.mxu0 0.0
    %1929 = vmatprep.subr.mxu0 0.0
    %1930 = vmatpush1.msra.mxu0 0.0
    %1931 = vmatprep.subr.mxu0 0.0
    %1932 = vmatpush1.msra.mxu0 0.0
    %1933 = vmatprep.subr.mxu0 0.0
    %1934 = vmatpush1.msra.mxu0 0.0
    %1935 = vmatprep.subr.mxu0 0.0
    %1936 = vmatpush1.msra.mxu0 0.0
    %1937 = vmatprep.subr.mxu0 0.0
    %1938 = vmatpush1.msra.mxu0 0.0
    %1939 = vmatprep.subr.mxu0 0.0
    %1940 = vmatpush1.msra.mxu0 0.0
    %1941 = vmatprep.subr.mxu0 0.0
    %1942 = vmatpush1.msra.mxu0 0.0
    %1943 = vmatprep.subr.mxu0 0.0
    %1944 = vmatpush1.msra.mxu0 0.0
    %1945 = vmatprep.subr.mxu0 0.0
    %1946 = vmatpush1.msra.mxu0 0.0
    %1947 = vmatprep.subr.mxu0 0.0
    %1948 = vmatpush1.msra.mxu0 0.0
    %1949 = vmatprep.subr.mxu0 0.0
    %1950 = vmatpush1.msra.mxu0 0.0
    %1951 = vmatprep.subr.mxu0 0.0
    %1952 = vmatpush1.msra.mxu0 0.0
    %1953 = vmatprep.subr.mxu0 0.0
    %1954 = vmatpush1.msra.mxu0 0.0
    %1955 = vmatprep.subr.mxu0 0.0
    %1956 = vmatpush1.msra.mxu0 0.0
    %1957 = vmatprep.subr.mxu0 0.0
    %1958 = vmatpush1.msra.mxu0 0.0
    %1959 = vmatprep.subr.mxu0 0.0
    %1960 = vmatpush1.msra.mxu0 0.0
    %1961 = vmatprep.subr.mxu0 0.0
    %1962 = vmatpush1.msra.mxu0 0.0
    %1963 = vmatprep.subr.mxu0 0.0
    %1964 = vmatpush1.msra.mxu0 0.0
    %1965 = vmatprep.mubr.f32.mxu0 0.0
    %1966 = vmatmul.mubr.f32.gmra.mrb[0].mxu0 %v1890
    %v1967 = vpop.f32.mrb[0].mxu0
    %v1968 = vadd.f32 %v1888, %v1967
    %v1969 = vpop.f32.mrb[0].mxu0
    %1970 = vmatprep.mubr.f32.mxu0 0.0
    %1971 = vmatmul.mubr.f32.gmra.mrb[0].mxu0 %v1893
    %v1972 = vpop.f32.mrb[0].mxu0
    %v1973 = vadd.f32 %v1888, %v1972
    %v1974 = vpop.f32.mrb[0].mxu0
    %1975 = vmatprep.mubr.f32.mxu0 0.0
    %1976 = vmatmul.mubr.f32.gmra.mrb[0].mxu0 %v1896
    %v1977 = vpop.f32.mrb[0].mxu0
    %v1978 = vadd.f32 %v1888, %v1977
    %v1979 = vpop.f32.mrb[0].mxu0
    %1980 = vmatprep.mubr.f32.mxu0 0.0
    %1981 = vmatmul.mubr.f32.gmra.mrb[0].mxu0 %v1899
    %v1982 = vpop.f32.mrb[0].mxu0
    %v1983 = vadd.f32 %v1888, %v1982
    %v1984 = vpop.f32.mrb[0].mxu0
    %1985 = vdwg.mxu0
    %v1986 = vadd.f32 %v40, %v1968
    %v1987 = vadd.f32 %v41, %v1973
    %v1988 = vadd.f32 %v42, %v1978
    %v1989 = vadd.f32 %v43, %v1983
    %v1990 = vsel %vm51, %v1986, 0.0
    %1991 = vadd.xlane.f32.xlu0 %v1990
    %v1992 = vpop.xlane.xlu0 %1991
    %v1993 = vsel %vm51, %v1987, 0.0
    %1994 = vadd.xlane.f32.xlu0 %v1993
    %v1995 = vpop.xlane.xlu0 %1994
    %v1996 = vsel %vm51, %v1988, 0.0
    %1997 = vadd.xlane.f32.xlu0 %v1996
    %v1998 = vpop.xlane.xlu0 %1997
    %v1999 = vsel %vm51, %v1989, 0.0
    %2000 = vadd.xlane.f32.xlu0 %v1999
    %v2001 = vpop.xlane.xlu0 %2000
    %v2002 = vmul.f32 %v1992, %v64
    %v2003 = vmul.f32 %v1995, %v64
    %v2004 = vmul.f32 %v1998, %v64
    %v2005 = vmul.f32 %v2001, %v64
    %v2006 = vsub.f32 %v1986, %v2002
    %v2007 = vsub.f32 %v1987, %v2003
    %v2008 = vsub.f32 %v1988, %v2004
    %v2009 = vsub.f32 %v1989, %v2005
    %v2010 = vmul.f32 %v2006, %v2006
    %v2011 = vmul.f32 %v2007, %v2007
    %v2012 = vmul.f32 %v2008, %v2008
    %v2013 = vmul.f32 %v2009, %v2009
    %v2014 = vsel %vm51, %v2010, 0.0
    %2015 = vadd.xlane.f32.xlu0 %v2014
    %v2016 = vpop.xlane.xlu0 %2015
    %v2017 = vsel %vm51, %v2011, 0.0
    %2018 = vadd.xlane.f32.xlu0 %v2017
    %v2019 = vpop.xlane.xlu0 %2018
    %v2020 = vsel %vm51, %v2012, 0.0
    %2021 = vadd.xlane.f32.xlu0 %v2020
    %v2022 = vpop.xlane.xlu0 %2021
    %v2023 = vsel %vm51, %v2013, 0.0
    %2024 = vadd.xlane.f32.xlu0 %v2023
    %v2025 = vpop.xlane.xlu0 %2024
    %v2026 = vmul.f32 %v2016, %v64
    %v2027 = vmul.f32 %v2019, %v64
    %v2028 = vmul.f32 %v2022, %v64
    %v2029 = vmul.f32 %v2025, %v64
    %v2030 = vadd.f32 %v2026, 1e-05
    %v2031 = vadd.f32 %v2027, 1e-05
    %v2032 = vadd.f32 %v2028, 1e-05
    %v2033 = vadd.f32 %v2029, 1e-05
    %v2034 = vrsqrt.pop %v2030
    %v2035 = vrsqrt.pop %v2031
    %v2036 = vrsqrt.pop %v2032
    %v2037 = vrsqrt.pop %v2033
    %v2038 = vmul.f32 %v2006, %v2034
    %v2039 = vmul.f32 %v2007, %v2035
    %v2040 = vmul.f32 %v2008, %v2036
    %v2041 = vmul.f32 %v2009, %v2037
    %v2042 = vlaneseq
    %v2043 = vshrl.u32 %v2042, 7
    %v2044 = vsub.s32 0, %v2043
    %v2045 = vrot.slane %v46, %v2044
    %v2046 = vmul.f32 %v2038, %v2045
    %v2047 = vmul.f32 %v2039, %v2045
    %v2048 = vmul.f32 %v2040, %v2045
    %v2049 = vmul.f32 %v2041, %v2045
    %v2050 = vlaneseq
    %v2051 = vshrl.u32 %v2050, 7
    %v2052 = vsub.s32 0, %v2051
    %v2053 = vrot.slane %v47, %v2052
    %v2054 = vadd.f32 %v2046, %v2053
    %v2055 = vadd.f32 %v2047, %v2053
    %v2056 = vadd.f32 %v2048, %v2053
    %v2057 = vadd.f32 %v2049, %v2053
    %v2058 = vld [vmem:[#allocation5 + $0x20] sm:$0xff]
    %v2059 = vld [vmem:[#allocation5 + $0x28] sm:$0xff]
    %v2060 = vld [vmem:[#allocation5 + $0x30] sm:$0xff]
    %v2061 = vld [vmem:[#allocation5 + $0x38] sm:$0xff]
    %v2062 = vlaneseq
    %v2063 = vshrl.u32 %v2062, 7
    %v2064 = vsub.s32 0, %v2063
    %v2065 = vrot.slane %v50, %v2064
    %v2067 = vsel %vm51, %v2054, 0
    %v2070 = vsel %vm51, %v2055, 0
    %v2073 = vsel %vm51, %v2056, 0
    %v2076 = vsel %vm51, %v2057, 0
    %2078 = vmatprep.subr.mxu0 0.0
    %2079 = vmatpush1.msra.mxu0 %v2058
    %2080 = vmatprep.subr.mxu0 0.0
    %2081 = vmatpush1.msra.mxu0 %v2059
    %2082 = vmatprep.subr.mxu0 0.0
    %2083 = vmatpush1.msra.mxu0 %v2060
    %2084 = vmatprep.subr.mxu0 0.0
    %2085 = vmatpush1.msra.mxu0 %v2061
    %2086 = vmatprep.subr.mxu0 0.0
    %2087 = vmatpush1.msra.mxu0 0.0
    %2088 = vmatprep.subr.mxu0 0.0
    %2089 = vmatpush1.msra.mxu0 0.0
    %2090 = vmatprep.subr.mxu0 0.0
    %2091 = vmatpush1.msra.mxu0 0.0
    %2092 = vmatprep.subr.mxu0 0.0
    %2093 = vmatpush1.msra.mxu0 0.0
    %2094 = vmatprep.subr.mxu0 0.0
    %2095 = vmatpush1.msra.mxu0 0.0
    %2096 = vmatprep.subr.mxu0 0.0
    %2097 = vmatpush1.msra.mxu0 0.0
    %2098 = vmatprep.subr.mxu0 0.0
    %2099 = vmatpush1.msra.mxu0 0.0
    %2100 = vmatprep.subr.mxu0 0.0
    %2101 = vmatpush1.msra.mxu0 0.0
    %2102 = vmatprep.subr.mxu0 0.0
    %2103 = vmatpush1.msra.mxu0 0.0
    %2104 = vmatprep.subr.mxu0 0.0
    %2105 = vmatpush1.msra.mxu0 0.0
    %2106 = vmatprep.subr.mxu0 0.0
    %2107 = vmatpush1.msra.mxu0 0.0
    %2108 = vmatprep.subr.mxu0 0.0
    %2109 = vmatpush1.msra.mxu0 0.0
    %2110 = vmatprep.subr.mxu0 0.0
    %2111 = vmatpush1.msra.mxu0 0.0
    %2112 = vmatprep.subr.mxu0 0.0
    %2113 = vmatpush1.msra.mxu0 0.0
    %2114 = vmatprep.subr.mxu0 0.0
    %2115 = vmatpush1.msra.mxu0 0.0
    %2116 = vmatprep.subr.mxu0 0.0
    %2117 = vmatpush1.msra.mxu0 0.0
    %2118 = vmatprep.subr.mxu0 0.0
    %2119 = vmatpush1.msra.mxu0 0.0
    %2120 = vmatprep.subr.mxu0 0.0
    %2121 = vmatpush1.msra.mxu0 0.0
    %2122 = vmatprep.subr.mxu0 0.0
    %2123 = vmatpush1.msra.mxu0 0.0
    %2124 = vmatprep.subr.mxu0 0.0
    %2125 = vmatpush1.msra.mxu0 0.0
    %2126 = vmatprep.subr.mxu0 0.0
    %2127 = vmatpush1.msra.mxu0 0.0
    %2128 = vmatprep.subr.mxu0 0.0
    %2129 = vmatpush1.msra.mxu0 0.0
    %2130 = vmatprep.subr.mxu0 0.0
    %2131 = vmatpush1.msra.mxu0 0.0
    %2132 = vmatprep.subr.mxu0 0.0
    %2133 = vmatpush1.msra.mxu0 0.0
    %2134 = vmatprep.subr.mxu0 0.0
    %2135 = vmatpush1.msra.mxu0 0.0
    %2136 = vmatprep.subr.mxu0 0.0
    %2137 = vmatpush1.msra.mxu0 0.0
    %2138 = vmatprep.subr.mxu0 0.0
    %2139 = vmatpush1.msra.mxu0 0.0
    %2140 = vmatprep.subr.mxu0 0.0
    %2141 = vmatpush1.msra.mxu0 0.0
    %2142 = vmatprep.mubr.f32.mxu0 0.0
    %2143 = vmatmul.mubr.f32.gmra.mrb[0].mxu0 %v2067
    %v2144 = vpop.f32.mrb[0].mxu0
    %v2145 = vadd.f32 %v2065, %v2144
    %v2146 = vpop.f32.mrb[0].mxu0
    %2147 = vmatprep.mubr.f32.mxu0 0.0
    %2148 = vmatmul.mubr.f32.gmra.mrb[0].mxu0 %v2070
    %v2149 = vpop.f32.mrb[0].mxu0
    %v2150 = vadd.f32 %v2065, %v2149
    %v2151 = vpop.f32.mrb[0].mxu0
    %2152 = vmatprep.mubr.f32.mxu0 0.0
    %2153 = vmatmul.mubr.f32.gmra.mrb[0].mxu0 %v2073
    %v2154 = vpop.f32.mrb[0].mxu0
    %v2155 = vadd.f32 %v2065, %v2154
    %v2156 = vpop.f32.mrb[0].mxu0
    %2157 = vmatprep.mubr.f32.mxu0 0.0
    %2158 = vmatmul.mubr.f32.gmra.mrb[0].mxu0 %v2076
    %v2159 = vpop.f32.mrb[0].mxu0
    %v2160 = vadd.f32 %v2065, %v2159
    %v2161 = vpop.f32.mrb[0].mxu0
    %2162 = vdwg.mxu0
    %v2163 = vld [vmem:[#allocation5 + $0x60] sm:$0xff]
    %v2164 = vld [vmem:[#allocation5 + $0x68] sm:$0xff]
    %v2165 = vld [vmem:[#allocation5 + $0x70] sm:$0xff]
    %v2166 = vld [vmem:[#allocation5 + $0x78] sm:$0xff]
    %v2167 = vld [vmem:[#allocation5 + $0x80] sm:$0xff]
    %v2168 = vld [vmem:[#allocation5 + $0x88] sm:$0xff]
    %v2169 = vld [vmem:[#allocation5 + $0x90] sm:$0xff]
    %v2170 = vld [vmem:[#allocation5 + $0x98] sm:$0xff]
    %v2171 = vmul.f32 %v2145, 0.5
    %v2172 = vmul.f32 %v2150, 0.5
    %v2173 = vmul.f32 %v2155, 0.5
    %v2174 = vmul.f32 %v2160, 0.5
    %v2175 = vmul.f32 %v2145, 0.70710677
    %v2176 = vmul.f32 %v2150, 0.70710677
    %v2177 = vmul.f32 %v2155, 0.70710677
    %v2178 = vmul.f32 %v2160, 0.70710677
    %v2179 = verf.f32.pop %v2175
    %v2180 = verf.f32.pop %v2176
    %v2181 = verf.f32.pop %v2177
    %v2182 = verf.f32.pop %v2178
    %v2183 = vadd.f32 %v2179, 1.0
    %v2184 = vadd.f32 %v2180, 1.0
    %v2185 = vadd.f32 %v2181, 1.0
    %v2186 = vadd.f32 %v2182, 1.0
    %v2187 = vmul.f32 %v2171, %v2183
    %v2188 = vmul.f32 %v2172, %v2184
    %v2189 = vmul.f32 %v2173, %v2185
    %v2190 = vmul.f32 %v2174, %v2186
    %2195 = vrot.lane.b32.xlu0 %v2187, 64
    %v2196 = vpop.permute.xlu0 %2195
    %2197 = vrot.lane.b32.xlu0 %v2188, 64
    %v2198 = vpop.permute.xlu0 %2197
    %2199 = vrot.lane.b32.xlu0 %v2189, 64
    %v2200 = vpop.permute.xlu0 %2199
    %2201 = vrot.lane.b32.xlu0 %v2190, 64
    %v2202 = vpop.permute.xlu0 %2201
    %v2207 = vmul.f32 %v2145, %v2196
    %v2208 = vmul.f32 %v2150, %v2198
    %v2209 = vmul.f32 %v2155, %v2200
    %v2210 = vmul.f32 %v2160, %v2202
    %v2211 = vlaneseq
    %v2212 = vshrl.u32 %v2211, 7
    %v2213 = vsub.s32 0, %v2212
    %v2214 = vrot.slane %v49, %v2213
    %vm2215 = vcmask 523264
    %v2217 = vsel %vm2215, %v2207, 0
    %v2220 = vsel %vm2215, %v2208, 0
    %v2223 = vsel %vm2215, %v2209, 0
    %v2226 = vsel %vm2215, %v2210, 0
    %2228 = vmatprep.subr.mxu0 0.0
    %2229 = vmatpush1.msra.mxu0 %v2163
    %2230 = vmatprep.subr.mxu0 0.0
    %2231 = vmatpush1.msra.mxu0 %v2164
    %2232 = vmatprep.subr.mxu0 0.0
    %2233 = vmatpush1.msra.mxu0 %v2165
    %2234 = vmatprep.subr.mxu0 0.0
    %2235 = vmatpush1.msra.mxu0 %v2166
    %2236 = vmatprep.subr.mxu0 0.0
    %2237 = vmatpush1.msra.mxu0 %v2167
    %2238 = vmatprep.subr.mxu0 0.0
    %2239 = vmatpush1.msra.mxu0 %v2168
    %2240 = vmatprep.subr.mxu0 0.0
    %2241 = vmatpush1.msra.mxu0 %v2169
    %2242 = vmatprep.subr.mxu0 0.0
    %2243 = vmatpush1.msra.mxu0 %v2170
    %2244 = vmatprep.subr.mxu0 0.0
    %2245 = vmatpush1.msra.mxu0 0.0
    %2246 = vmatprep.subr.mxu0 0.0
    %2247 = vmatpush1.msra.mxu0 0.0
    %2248 = vmatprep.subr.mxu0 0.0
    %2249 = vmatpush1.msra.mxu0 0.0
    %2250 = vmatprep.subr.mxu0 0.0
    %2251 = vmatpush1.msra.mxu0 0.0
    %2252 = vmatprep.subr.mxu0 0.0
    %2253 = vmatpush1.msra.mxu0 0.0
    %2254 = vmatprep.subr.mxu0 0.0
    %2255 = vmatpush1.msra.mxu0 0.0
    %2256 = vmatprep.subr.mxu0 0.0
    %2257 = vmatpush1.msra.mxu0 0.0
    %2258 = vmatprep.subr.mxu0 0.0
    %2259 = vmatpush1.msra.mxu0 0.0
    %2260 = vmatprep.subr.mxu0 0.0
    %2261 = vmatpush1.msra.mxu0 0.0
    %2262 = vmatprep.subr.mxu0 0.0
    %2263 = vmatpush1.msra.mxu0 0.0
    %2264 = vmatprep.subr.mxu0 0.0
    %2265 = vmatpush1.msra.mxu0 0.0
    %2266 = vmatprep.subr.mxu0 0.0
    %2267 = vmatpush1.msra.mxu0 0.0
    %2268 = vmatprep.subr.mxu0 0.0
    %2269 = vmatpush1.msra.mxu0 0.0
    %2270 = vmatprep.subr.mxu0 0.0
    %2271 = vmatpush1.msra.mxu0 0.0
    %2272 = vmatprep.subr.mxu0 0.0
    %2273 = vmatpush1.msra.mxu0 0.0
    %2274 = vmatprep.subr.mxu0 0.0
    %2275 = vmatpush1.msra.mxu0 0.0
    %2276 = vmatprep.subr.mxu0 0.0
    %2277 = vmatpush1.msra.mxu0 0.0
    %2278 = vmatprep.subr.mxu0 0.0
    %2279 = vmatpush1.msra.mxu0 0.0
    %2280 = vmatprep.subr.mxu0 0.0
    %2281 = vmatpush1.msra.mxu0 0.0
    %2282 = vmatprep.subr.mxu0 0.0
    %2283 = vmatpush1.msra.mxu0 0.0
    %2284 = vmatprep.subr.mxu0 0.0
    %2285 = vmatpush1.msra.mxu0 0.0
    %2286 = vmatprep.subr.mxu0 0.0
    %2287 = vmatpush1.msra.mxu0 0.0
    %2288 = vmatprep.subr.mxu0 0.0
    %2289 = vmatpush1.msra.mxu0 0.0
    %2290 = vmatprep.subr.mxu0 0.0
    %2291 = vmatpush1.msra.mxu0 0.0
    %2292 = vmatprep.mubr.f32.mxu0 0.0
    %2293 = vmatmul.mubr.f32.gmra.mrb[0].mxu0 %v2217
    %v2294 = vpop.f32.mrb[0].mxu0
    %v2295 = vadd.f32 %v2214, %v2294
    %v2296 = vpop.f32.mrb[0].mxu0
    %2297 = vmatprep.mubr.f32.mxu0 0.0
    %2298 = vmatmul.mubr.f32.gmra.mrb[0].mxu0 %v2220
    %v2299 = vpop.f32.mrb[0].mxu0
    %v2300 = vadd.f32 %v2214, %v2299
    %v2301 = vpop.f32.mrb[0].mxu0
    %2302 = vmatprep.mubr.f32.mxu0 0.0
    %2303 = vmatmul.mubr.f32.gmra.mrb[0].mxu0 %v2223
    %v2304 = vpop.f32.mrb[0].mxu0
    %v2305 = vadd.f32 %v2214, %v2304
    %v2306 = vpop.f32.mrb[0].mxu0
    %2307 = vmatprep.mubr.f32.mxu0 0.0
    %2308 = vmatmul.mubr.f32.gmra.mrb[0].mxu0 %v2226
    %v2309 = vpop.f32.mrb[0].mxu0
    %v2310 = vadd.f32 %v2214, %v2309
    %v2311 = vpop.f32.mrb[0].mxu0
    %2312 = vdwg.mxu0
    %v2313 = vadd.f32 %v1986, %v2295
    %v2314 = vadd.f32 %v1987, %v2300
    %v2315 = vadd.f32 %v1988, %v2305
    %v2316 = vadd.f32 %v1989, %v2310
    %2317 = vst.msk [vmem:[#allocation7] sm:$0xff] %vm51, %v2313
    %2318 = vst.msk [vmem:[#allocation7 + $0x8] sm:$0xff] %vm51, %v2314
    %2319 = vst.msk [vmem:[#allocation7 + $0x10] sm:$0xff] %vm51, %v2315
    %2320 = vst.msk [vmem:[#allocation7 + $0x18] sm:$0xff] %vm51, %v2316
    // Predicated region
    $region18: #{tpu_custom_call.1} parent=1 // pred_check
      _
    $region19: #{tpu_custom_call.1} parent=1 // pred_check_branch
      %2322 = sbr.rel (0) target = $region21
    $region20: #{tpu_custom_call.1} parent=1 // pred_region
      %s2324 = ssub.s32 512, 512
      %2325 = vsyncadd [#allocation4], %s2324
      %s2326 = sshll.u32 [#allocation7], 4
      %s2327 = int_to_ptr.vmem [resolvable:$true] %s2326
      %2332 = dma.vmem_to_hbm [thread:$0]  %s2327, 512, %s2, [#allocation4], 128, 128, 8
    $region21: #{tpu_custom_call.1} parent=1 // pred_fallthru
      _
    // Predicated region
    $region22: #{tpu_custom_call.1} parent=1 // pred_check
      _
    $region23: #{tpu_custom_call.1} parent=1 // pred_check_branch
      %2334 = sbr.rel (0) target = $region25
    $region24: #{tpu_custom_call.1} parent=1 // pred_region
      %2335 = dma.done [#allocation4], 512
    $region25: #{tpu_custom_call.1} parent=1 // pred_fallthru
      _
    %2336 = vsyncpa [#allocation3], 1
    %2337 = vsyncpa [#allocation6], 1
    %2338 = vsyncpa [#allocation4], 1

</llo_original>
